<compile_context>
chip_gen: v7x
topology: tpu7x:2x2x1
jax: 0.10.0
libtpu: 0.0.40
codegen_flags: <defaults>
</compile_context>

<pallas_src>
import functools

import jax
import jax.numpy as jnp
from jax import lax
from jax.experimental import pallas as pl
from jax.experimental.pallas import tpu as pltpu


THRESHOLD = 14.0


def _softplus(x):
    # PyTorch nn.Softplus(beta=0.5, threshold=14)
    bx = 0.5 * x
    return jnp.where(bx > THRESHOLD, x,
                     2.0 * jnp.log(1.0 + jnp.exp(jnp.minimum(bx, THRESHOLD))))


def _round_up(x, m):
    return ((x + m - 1) // m) * m


def mli_kernel(src_ref, dst_ref,                      # scalar-prefetch (SMEM)
               node0_ref, rbf_ref, edgef_ref,         # tensor inputs
               wn1_ref, bn1_ref,
               wv1_ref, bv1_ref, wv2_ref, bv2_ref,
               w34_ref, b34_ref,
               we1_ref, be1_ref,
               wn2_ref, bn2_ref, wn3_ref, bn3_ref,
               node_out_ref, edge_out_ref,            # outputs
               new_node_sc, node_acc_sc, msg_sc,      # VMEM scratch
               *, num_edges, tile_e):
    f32 = jnp.float32
    e = pl.program_id(0)
    tile_base = e * tile_e
    unroll = tile_e <= 32

    # ---- init (first edge tile): new_node = node_layer1(node_0); zero accumulator
    @pl.when(e == 0)
    def _init():
        new_node_sc[...] = (jnp.dot(node0_ref[...], wn1_ref[...],
                                    preferred_element_type=f32) + bn1_ref[...])
        node_acc_sc[...] = jnp.zeros_like(node_acc_sc)

    # ---- VEConv.update_rbf: h = linear2(softplus(linear1(rbf)))
    h = jnp.dot(
        _softplus(jnp.dot(rbf_ref[...], wv1_ref[...],
                          preferred_element_type=f32) + bv1_ref[...]),
        wv2_ref[...], preferred_element_type=f32) + bv2_ref[...]

    # ---- VEConv.update_edge: ef = linear4(linear3(edge_f))  (folded affine)
    ef = jnp.dot(edgef_ref[...], w34_ref[...],
                 preferred_element_type=f32) + b34_ref[...]

    # ---- g.edata['edge_f'] = softplus(edge_layer1(edge_f))   (per-tile output)
    edge_out_ref[...] = _softplus(
        jnp.dot(ef, we1_ref[...], preferred_element_type=f32) + be1_ref[...])

    # ---- gather new_node[src] for this edge tile (index-based, O(E*D))
    def gather_body(i, carry):
        s = src_ref[tile_base + i]
        msg_sc[pl.ds(i, 1), :] = new_node_sc[pl.ds(s, 1), :]
        return carry
    lax.fori_loop(0, tile_e, gather_body, None, unroll=unroll)

    # ---- message: u_mul_e('new_node','h') + copy_e('edge_f')
    msg_sc[...] = msg_sc[...] * h + ef

    # ---- scatter-add onto destination nodes (mask padded edges)
    def scatter_body(i, carry):
        eid = tile_base + i
        d = dst_ref[eid]
        w = jnp.where(eid < num_edges, 1.0, 0.0).astype(f32)
        node_acc_sc[pl.ds(d, 1), :] = (node_acc_sc[pl.ds(d, 1), :]
                                       + w * msg_sc[pl.ds(i, 1), :])
        return carry
    lax.fori_loop(0, tile_e, scatter_body, None, unroll=unroll)

    # ---- finalize (last edge tile): node_1 = node_0 + L3(softplus(L2(node_agg)))
    #      (dropout p=0.1 -> identity in eval mode)
    @pl.when(e == pl.num_programs(0) - 1)
    def _finalize():
        a = _softplus(jnp.dot(node_acc_sc[...], wn2_ref[...],
                              preferred_element_type=f32) + bn2_ref[...])
        node_out_ref[...] = node0_ref[...] + (
            jnp.dot(a, wn3_ref[...], preferred_element_type=f32) + bn3_ref[...])


@functools.partial(jax.jit, static_argnames=("tile_e",))
def multi_level_interaction(node0, rbf, edge_f, src, dst, params, *, tile_e=16):
    N, D = node0.shape
    E, R = rbf.shape
    f32 = jnp.float32

    Dp = _round_up(D, 128)      # lane-dense feature dim
    Rp = _round_up(R, 128)      # lane-dense rbf (contraction) dim
    Np = _round_up(N, 8)        # sublane-aligned node count
    Ep = _round_up(E, tile_e)   # edge count padded to tile multiple

    def pad2(x, r, c):
        x = x.astype(f32)
        return jnp.pad(x, ((0, r - x.shape[0]), (0, c - x.shape[1])))

    def pad1(x, n):
        return jnp.pad(x.astype(jnp.int32), (0, n - x.shape[0]))

    # Fold VEConv linear_layer3 -> linear_layer4 into a single affine map.
    w34 = params["wv3"] @ params["wv4"]
    b34 = params["bv3"] @ params["wv4"] + params["bv4"]

    node0_p = pad2(node0, Np, Dp)
    rbf_p = pad2(rbf, Ep, Rp)
    edge_f_p = pad2(edge_f, Ep, Dp)
    src_p = pad1(src, Ep)        # padded edges point at node 0, masked in kernel
    dst_p = pad1(dst, Ep)

    wn1 = pad2(params["wn1"], Dp, Dp); bn1 = pad2(params["bn1"], 1, Dp)
    wv1 = pad2(params["wv1"], Rp, Dp); bv1 = pad2(params["bv1"], 1, Dp)
    wv2 = pad2(params["wv2"], Dp, Dp); bv2 = pad2(params["bv2"], 1, Dp)
    w34 = pad2(w34, Dp, Dp);           b34 = pad2(b34, 1, Dp)
    we1 = pad2(params["we1"], Dp, Dp); be1 = pad2(params["be1"], 1, Dp)
    wn2 = pad2(params["wn2"], Dp, Dp); bn2 = pad2(params["bn2"], 1, Dp)
    wn3 = pad2(params["wn3"], Dp, Dp); bn3 = pad2(params["bn3"], 1, Dp)

    weights = (wn1, bn1, wv1, bv1, wv2, bv2, w34, b34, we1, be1, wn2, bn2, wn3, bn3)

    resident = lambda e, s, d: (0, 0)   # same block every step -> stays in VMEM
    per_edge = lambda e, s, d: (e, 0)   # streamed / pipelined per edge tile

    grid_spec = pltpu.PrefetchScalarGridSpec(
        num_scalar_prefetch=2,
        grid=(Ep // tile_e,),
        in_specs=[pl.BlockSpec((Np, Dp), resident),        # node_0 (resident)
                  pl.BlockSpec((tile_e, Rp), per_edge),    # rbf tile
                  pl.BlockSpec((tile_e, Dp), per_edge)]    # edge_f tile
                 + [pl.BlockSpec(w.shape, resident) for w in weights],
        out_specs=[pl.BlockSpec((Np, Dp), resident),       # node_1 (resident acc out)
                   pl.BlockSpec((tile_e, Dp), per_edge)],  # edge_f out, per tile
        scratch_shapes=[pltpu.VMEM((Np, Dp), f32),         # new_node
                        pltpu.VMEM((Np, Dp), f32),         # node accumulator
                        pltpu.VMEM((tile_e, Dp), f32)],    # per-tile gather/msg buf
    )

    kernel = functools.partial(mli_kernel, num_edges=E, tile_e=tile_e)

    node_out_p, edge_out_p = pl.pallas_call(
        kernel,
        grid_spec=grid_spec,
        out_shape=(jax.ShapeDtypeStruct((Np, Dp), f32),
                   jax.ShapeDtypeStruct((Ep, Dp), f32)),
        compiler_params=pltpu.CompilerParams(
            dimension_semantics=("arbitrary",),            # edge axis is a reduction
            vmem_limit_bytes=32 * 1024 * 1024),
    )(src_p, dst_p, node0_p, rbf_p, edge_f_p, *weights)

    return node_out_p[:N, :D], edge_out_p[:E, :D]


def _reference(node0, rbf, edge_f, src, dst, p):
    new_node = node0 @ p["wn1"] + p["bn1"]
    h = _softplus(rbf @ p["wv1"] + p["bv1"]) @ p["wv2"] + p["bv2"]
    ef = (edge_f @ p["wv3"] + p["bv3"]) @ p["wv4"] + p["bv4"]
    msg = new_node[src] * h + ef
    node_agg = jnp.zeros_like(new_node).at[dst].add(msg)
    edge_out = _softplus(ef @ p["we1"] + p["be1"])
    nn2 = _softplus(node_agg @ p["wn2"] + p["bn2"]) @ p["wn3"] + p["bn3"]
    return node0 + nn2, edge_out


def _make_linear(key, fan_in, fan_out):
    kw, kb = jax.random.split(key)
    bound = 1.0 / (fan_in ** 0.5)
    w = jax.random.uniform(kw, (fan_in, fan_out), jnp.float32, -bound, bound)
    b = jax.random.uniform(kb, (1, fan_out), jnp.float32, -bound, bound)
    return w, b


if __name__ == "__main__":
    # Small synthetic graph: N nodes, E directed edges, hidden dim D, rbf dim R.
    N, E, D, R = 16, 50, 32, 16

    key = jax.random.PRNGKey(0)
    keys = jax.random.split(key, 16)

    node0 = jax.random.normal(keys[0], (N, D), jnp.float32)
    rbf = jax.random.normal(keys[1], (E, R), jnp.float32)
    edge_f = jax.random.normal(keys[2], (E, D), jnp.float32)
    src = jax.random.randint(keys[3], (E,), 0, N, dtype=jnp.int32)
    dst = jax.random.randint(keys[4], (E,), 0, N, dtype=jnp.int32)

    params = {}
    # MultiLevelInteraction linears
    params["wn1"], params["bn1"] = _make_linear(keys[5], D, D)   # node_layer1
    params["we1"], params["be1"] = _make_linear(keys[6], D, D)   # edge_layer1
    params["wn2"], params["bn2"] = _make_linear(keys[7], D, D)   # node_layer2
    params["wn3"], params["bn3"] = _make_linear(keys[8], D, D)   # node_layer3
    # VEConv linears
    params["wv1"], params["bv1"] = _make_linear(keys[9], R, D)   # linear_layer1 (rbf)
    params["wv2"], params["bv2"] = _make_linear(keys[10], D, D)  # linear_layer2
    params["wv3"], params["bv3"] = _make_linear(keys[11], D, D)  # linear_layer3
    params["wv4"], params["bv4"] = _make_linear(keys[12], D, D)  # linear_layer4 (see TODO above)

    node_out, edge_out = multi_level_interaction(node0, rbf, edge_f, src, dst,
                                                 params, tile_e=16)
    jax.block_until_ready((node_out, edge_out))

    ref_node, ref_edge = _reference(node0, rbf, edge_f, src, dst, params)
    assert jnp.allclose(node_out, ref_node, atol=2e-4, rtol=2e-4)
    assert jnp.allclose(edge_out, ref_edge, atol=2e-4, rtol=2e-4)

    print("KERNEL_OK")
</pallas_src>

<mosaic_0001>
module attributes {stable_mosaic.version = 11 : i64} {
  func.func @mli_kernel(%arg0: i32, %arg1: memref<64xi32, #tpu.memory_space<smem>>, %arg2: memref<64xi32, #tpu.memory_space<smem>>, %arg3: memref<16x128xf32, #tpu.memory_space<vmem>>, %arg4: memref<16x128xf32, #tpu.memory_space<vmem>>, %arg5: memref<16x128xf32, #tpu.memory_space<vmem>>, %arg6: memref<128x128xf32, #tpu.memory_space<vmem>>, %arg7: memref<1x128xf32, #tpu.memory_space<vmem>>, %arg8: memref<128x128xf32, #tpu.memory_space<vmem>>, %arg9: memref<1x128xf32, #tpu.memory_space<vmem>>, %arg10: memref<128x128xf32, #tpu.memory_space<vmem>>, %arg11: memref<1x128xf32, #tpu.memory_space<vmem>>, %arg12: memref<128x128xf32, #tpu.memory_space<vmem>>, %arg13: memref<1x128xf32, #tpu.memory_space<vmem>>, %arg14: memref<128x128xf32, #tpu.memory_space<vmem>>, %arg15: memref<1x128xf32, #tpu.memory_space<vmem>>, %arg16: memref<128x128xf32, #tpu.memory_space<vmem>>, %arg17: memref<1x128xf32, #tpu.memory_space<vmem>>, %arg18: memref<128x128xf32, #tpu.memory_space<vmem>>, %arg19: memref<1x128xf32, #tpu.memory_space<vmem>>, %arg20: memref<16x128xf32, #tpu.memory_space<vmem>>, %arg21: memref<16x128xf32, #tpu.memory_space<vmem>>, %arg22: memref<16x128xf32, #tpu.memory_space<vmem>>, %arg23: memref<16x128xf32, #tpu.memory_space<vmem>>, %arg24: memref<16x128xf32, #tpu.memory_space<vmem>>) attributes {dimension_semantics = [#tpu.dimension_semantics<arbitrary>], iteration_bounds = array<i64: 4>, scalar_prefetch = 2 : i64, scratch_operands = 3 : i64, tpu.core_type = #tpu.core_type<tc>, window_params = [{pipeline_mode = #tpu.pipeline_mode<synchronous>, transform_indices = @transform_0, window_bounds = array<i64: 16, 128>}, {transform_indices = @transform_1, window_bounds = array<i64: 16, 128>}, {transform_indices = @transform_2, window_bounds = array<i64: 16, 128>}, {pipeline_mode = #tpu.pipeline_mode<synchronous>, transform_indices = @transform_3, window_bounds = array<i64: 128, 128>}, {pipeline_mode = #tpu.pipeline_mode<synchronous>, transform_indices = @transform_4, window_bounds = array<i64: 1, 128>}, {pipeline_mode = #tpu.pipeline_mode<synchronous>, transform_indices = @transform_5, window_bounds = array<i64: 128, 128>}, {pipeline_mode = #tpu.pipeline_mode<synchronous>, transform_indices = @transform_6, window_bounds = array<i64: 1, 128>}, {pipeline_mode = #tpu.pipeline_mode<synchronous>, transform_indices = @transform_7, window_bounds = array<i64: 128, 128>}, {pipeline_mode = #tpu.pipeline_mode<synchronous>, transform_indices = @transform_8, window_bounds = array<i64: 1, 128>}, {pipeline_mode = #tpu.pipeline_mode<synchronous>, transform_indices = @transform_9, window_bounds = array<i64: 128, 128>}, {pipeline_mode = #tpu.pipeline_mode<synchronous>, transform_indices = @transform_10, window_bounds = array<i64: 1, 128>}, {pipeline_mode = #tpu.pipeline_mode<synchronous>, transform_indices = @transform_11, window_bounds = array<i64: 128, 128>}, {pipeline_mode = #tpu.pipeline_mode<synchronous>, transform_indices = @transform_12, window_bounds = array<i64: 1, 128>}, {pipeline_mode = #tpu.pipeline_mode<synchronous>, transform_indices = @transform_13, window_bounds = array<i64: 128, 128>}, {pipeline_mode = #tpu.pipeline_mode<synchronous>, transform_indices = @transform_14, window_bounds = array<i64: 1, 128>}, {pipeline_mode = #tpu.pipeline_mode<synchronous>, transform_indices = @transform_15, window_bounds = array<i64: 128, 128>}, {pipeline_mode = #tpu.pipeline_mode<synchronous>, transform_indices = @transform_16, window_bounds = array<i64: 1, 128>}, {pipeline_mode = #tpu.pipeline_mode<synchronous>, transform_indices = @transform_17, window_bounds = array<i64: 16, 128>}, {transform_indices = @transform_18, window_bounds = array<i64: 16, 128>}]} {
    %c16_i32 = arith.constant 16 : i32
    %0 = arith.muli %arg0, %c16_i32 : i32
    %c0_i32 = arith.constant 0 : i32
    %1 = arith.cmpi eq, %arg0, %c0_i32 : i32
    %2 = arith.extui %1 : i1 to i32
    %c0_i32_0 = arith.constant 0 : i32
    %3 = arith.cmpi ne, %2, %c0_i32_0 : i32
    scf.if %3 {
      %c0_187 = arith.constant 0 : index
      %c0_188 = arith.constant 0 : index
      %396 = vector.load %arg3[%c0_187, %c0_188] : memref<16x128xf32, #tpu.memory_space<vmem>>, vector<16x128xf32>
      %c0_189 = arith.constant 0 : index
      %c0_190 = arith.constant 0 : index
      %397 = vector.load %arg6[%c0_189, %c0_190] : memref<128x128xf32, #tpu.memory_space<vmem>>, vector<128x128xf32>
      %cst_191 = arith.constant dense<0.000000e+00> : vector<16x128xf32>
      %398 = tpu.matmul %396, %397, %cst_191 {dimension_numbers = #tpu.dot_dimension_numbers<[1], [0], [0], [1], [0, 0, 1, 1], [], []>} : vector<16x128xf32>, vector<128x128xf32>, vector<16x128xf32> -> vector<16x128xf32>
      %c0_192 = arith.constant 0 : index
      %c0_193 = arith.constant 0 : index
      %399 = vector.load %arg7[%c0_192, %c0_193] : memref<1x128xf32, #tpu.memory_space<vmem>>, vector<1x128xf32>
      %400 = vector.broadcast %399 : vector<1x128xf32> to vector<16x128xf32>
      %401 = arith.addf %398, %400 : vector<16x128xf32>
      %c0_194 = arith.constant 0 : index
      %c0_195 = arith.constant 0 : index
      %402 = vector.load %arg22[%c0_194, %c0_195] : memref<16x128xf32, #tpu.memory_space<vmem>>, vector<16x128xf32>
      tpu.vector_store %arg22[%c0_194, %c0_195], %401 {strides = array<i32>} : memref<16x128xf32, #tpu.memory_space<vmem>>, vector<16x128xf32>,
      %cst_196 = arith.constant 0.000000e+00 : f32
      %403 = vector.broadcast %cst_196 : f32 to vector<16x128xf32>
      %c0_197 = arith.constant 0 : index
      %c0_198 = arith.constant 0 : index
      %404 = vector.load %arg23[%c0_197, %c0_198] : memref<16x128xf32, #tpu.memory_space<vmem>>, vector<16x128xf32>
      tpu.vector_store %arg23[%c0_197, %c0_198], %403 {strides = array<i32>} : memref<16x128xf32, #tpu.memory_space<vmem>>, vector<16x128xf32>,
    } else {
    }
    %c0 = arith.constant 0 : index
    %c0_1 = arith.constant 0 : index
    %4 = vector.load %arg4[%c0, %c0_1] : memref<16x128xf32, #tpu.memory_space<vmem>>, vector<16x128xf32>
    %c0_2 = arith.constant 0 : index
    %c0_3 = arith.constant 0 : index
    %5 = vector.load %arg8[%c0_2, %c0_3] : memref<128x128xf32, #tpu.memory_space<vmem>>, vector<128x128xf32>
    %cst = arith.constant dense<0.000000e+00> : vector<16x128xf32>
    %6 = tpu.matmul %4, %5, %cst {dimension_numbers = #tpu.dot_dimension_numbers<[1], [0], [0], [1], [0, 0, 1, 1], [], []>} : vector<16x128xf32>, vector<128x128xf32>, vector<16x128xf32> -> vector<16x128xf32>
    %c0_4 = arith.constant 0 : index
    %c0_5 = arith.constant 0 : index
    %7 = vector.load %arg9[%c0_4, %c0_5] : memref<1x128xf32, #tpu.memory_space<vmem>>, vector<1x128xf32>
    %8 = vector.broadcast %7 : vector<1x128xf32> to vector<16x128xf32>
    %9 = arith.addf %6, %8 : vector<16x128xf32>
    %cst_6 = arith.constant 5.000000e-01 : f32
    %10 = vector.broadcast %cst_6 : f32 to vector<16x128xf32>
    %11 = arith.mulf %10, %9 : vector<16x128xf32>
    %cst_7 = arith.constant 1.400000e+01 : f32
    %12 = vector.broadcast %cst_7 : f32 to vector<16x128xf32>
    %13 = arith.cmpf ogt, %11, %12 : vector<16x128xf32>
    %cst_8 = arith.constant 1.400000e+01 : f32
    %14 = vector.broadcast %cst_8 : f32 to vector<16x128xf32>
    %15 = arith.minimumf %11, %14 : vector<16x128xf32>
    %16 = math.exp %15 : vector<16x128xf32>
    %cst_9 = arith.constant 1.000000e+00 : f32
    %17 = vector.broadcast %cst_9 : f32 to vector<16x128xf32>
    %18 = arith.addf %17, %16 : vector<16x128xf32>
    %19 = math.log %18 : vector<16x128xf32>
    %cst_10 = arith.constant 2.000000e+00 : f32
    %20 = vector.broadcast %cst_10 : f32 to vector<16x128xf32>
    %21 = arith.mulf %20, %19 : vector<16x128xf32>
    %22 = arith.select %13, %9, %21 : vector<16x128xi1>, vector<16x128xf32>
    %c0_11 = arith.constant 0 : index
    %c0_12 = arith.constant 0 : index
    %23 = vector.load %arg10[%c0_11, %c0_12] : memref<128x128xf32, #tpu.memory_space<vmem>>, vector<128x128xf32>
    %cst_13 = arith.constant dense<0.000000e+00> : vector<16x128xf32>
    %24 = tpu.matmul %22, %23, %cst_13 {dimension_numbers = #tpu.dot_dimension_numbers<[1], [0], [0], [1], [0, 0, 1, 1], [], []>} : vector<16x128xf32>, vector<128x128xf32>, vector<16x128xf32> -> vector<16x128xf32>
    %c0_14 = arith.constant 0 : index
    %c0_15 = arith.constant 0 : index
    %25 = vector.load %arg11[%c0_14, %c0_15] : memref<1x128xf32, #tpu.memory_space<vmem>>, vector<1x128xf32>
    %26 = vector.broadcast %25 : vector<1x128xf32> to vector<16x128xf32>
    %27 = arith.addf %24, %26 : vector<16x128xf32>
    %c0_16 = arith.constant 0 : index
    %c0_17 = arith.constant 0 : index
    %28 = vector.load %arg5[%c0_16, %c0_17] : memref<16x128xf32, #tpu.memory_space<vmem>>, vector<16x128xf32>
    %c0_18 = arith.constant 0 : index
    %c0_19 = arith.constant 0 : index
    %29 = vector.load %arg12[%c0_18, %c0_19] : memref<128x128xf32, #tpu.memory_space<vmem>>, vector<128x128xf32>
    %cst_20 = arith.constant dense<0.000000e+00> : vector<16x128xf32>
    %30 = tpu.matmul %28, %29, %cst_20 {dimension_numbers = #tpu.dot_dimension_numbers<[1], [0], [0], [1], [0, 0, 1, 1], [], []>} : vector<16x128xf32>, vector<128x128xf32>, vector<16x128xf32> -> vector<16x128xf32>
    %c0_21 = arith.constant 0 : index
    %c0_22 = arith.constant 0 : index
    %31 = vector.load %arg13[%c0_21, %c0_22] : memref<1x128xf32, #tpu.memory_space<vmem>>, vector<1x128xf32>
    %32 = vector.broadcast %31 : vector<1x128xf32> to vector<16x128xf32>
    %33 = arith.addf %30, %32 : vector<16x128xf32>
    %c0_23 = arith.constant 0 : index
    %c0_24 = arith.constant 0 : index
    %34 = vector.load %arg14[%c0_23, %c0_24] : memref<128x128xf32, #tpu.memory_space<vmem>>, vector<128x128xf32>
    %cst_25 = arith.constant dense<0.000000e+00> : vector<16x128xf32>
    %35 = tpu.matmul %33, %34, %cst_25 {dimension_numbers = #tpu.dot_dimension_numbers<[1], [0], [0], [1], [0, 0, 1, 1], [], []>} : vector<16x128xf32>, vector<128x128xf32>, vector<16x128xf32> -> vector<16x128xf32>
    %c0_26 = arith.constant 0 : index
    %c0_27 = arith.constant 0 : index
    %36 = vector.load %arg15[%c0_26, %c0_27] : memref<1x128xf32, #tpu.memory_space<vmem>>, vector<1x128xf32>
    %37 = vector.broadcast %36 : vector<1x128xf32> to vector<16x128xf32>
    %38 = arith.addf %35, %37 : vector<16x128xf32>
    %cst_28 = arith.constant 5.000000e-01 : f32
    %39 = vector.broadcast %cst_28 : f32 to vector<16x128xf32>
    %40 = arith.mulf %39, %38 : vector<16x128xf32>
    %cst_29 = arith.constant 1.400000e+01 : f32
    %41 = vector.broadcast %cst_29 : f32 to vector<16x128xf32>
    %42 = arith.cmpf ogt, %40, %41 : vector<16x128xf32>
    %cst_30 = arith.constant 1.400000e+01 : f32
    %43 = vector.broadcast %cst_30 : f32 to vector<16x128xf32>
    %44 = arith.minimumf %40, %43 : vector<16x128xf32>
    %45 = math.exp %44 : vector<16x128xf32>
    %cst_31 = arith.constant 1.000000e+00 : f32
    %46 = vector.broadcast %cst_31 : f32 to vector<16x128xf32>
    %47 = arith.addf %46, %45 : vector<16x128xf32>
    %48 = math.log %47 : vector<16x128xf32>
    %cst_32 = arith.constant 2.000000e+00 : f32
    %49 = vector.broadcast %cst_32 : f32 to vector<16x128xf32>
    %50 = arith.mulf %49, %48 : vector<16x128xf32>
    %51 = arith.select %42, %38, %50 : vector<16x128xi1>, vector<16x128xf32>
    %c0_33 = arith.constant 0 : index
    %c0_34 = arith.constant 0 : index
    %52 = vector.load %arg21[%c0_33, %c0_34] : memref<16x128xf32, #tpu.memory_space<vmem>>, vector<16x128xf32>
    tpu.vector_store %arg21[%c0_33, %c0_34], %51 {strides = array<i32>} : memref<16x128xf32, #tpu.memory_space<vmem>>, vector<16x128xf32>,
    %c0_i32_35 = arith.constant 0 : i32
    %53 = arith.addi %0, %c0_i32_35 : i32
    %54 = arith.index_cast %53 : i32 to index
    %55 = memref.load %arg1[%54] : memref<64xi32, #tpu.memory_space<smem>>
    %56 = arith.index_cast %55 : i32 to index
    %c0_36 = arith.constant 0 : index
    %57 = vector.load %arg22[%56, %c0_36] : memref<16x128xf32, #tpu.memory_space<vmem>>, vector<1x128xf32>
    %58 = arith.index_cast %c0_i32_35 : i32 to index
    %c0_37 = arith.constant 0 : index
    %59 = vector.load %arg24[%58, %c0_37] : memref<16x128xf32, #tpu.memory_space<vmem>>, vector<1x128xf32>
    tpu.vector_store %arg24[%58, %c0_37], %57 {strides = array<i32>} : memref<16x128xf32, #tpu.memory_space<vmem>>, vector<1x128xf32>,
    %c1_i32 = arith.constant 1 : i32
    %60 = arith.addi %0, %c1_i32 : i32
    %61 = arith.index_cast %60 : i32 to index
    %62 = memref.load %arg1[%61] : memref<64xi32, #tpu.memory_space<smem>>
    %63 = arith.index_cast %62 : i32 to index
    %c0_38 = arith.constant 0 : index
    %64 = vector.load %arg22[%63, %c0_38] : memref<16x128xf32, #tpu.memory_space<vmem>>, vector<1x128xf32>
    %65 = arith.index_cast %c1_i32 : i32 to index
    %c0_39 = arith.constant 0 : index
    %66 = vector.load %arg24[%65, %c0_39] : memref<16x128xf32, #tpu.memory_space<vmem>>, vector<1x128xf32>
    tpu.vector_store %arg24[%65, %c0_39], %64 {strides = array<i32>} : memref<16x128xf32, #tpu.memory_space<vmem>>, vector<1x128xf32>,
    %c2_i32 = arith.constant 2 : i32
    %67 = arith.addi %0, %c2_i32 : i32
    %68 = arith.index_cast %67 : i32 to index
    %69 = memref.load %arg1[%68] : memref<64xi32, #tpu.memory_space<smem>>
    %70 = arith.index_cast %69 : i32 to index
    %c0_40 = arith.constant 0 : index
    %71 = vector.load %arg22[%70, %c0_40] : memref<16x128xf32, #tpu.memory_space<vmem>>, vector<1x128xf32>
    %72 = arith.index_cast %c2_i32 : i32 to index
    %c0_41 = arith.constant 0 : index
    %73 = vector.load %arg24[%72, %c0_41] : memref<16x128xf32, #tpu.memory_space<vmem>>, vector<1x128xf32>
    tpu.vector_store %arg24[%72, %c0_41], %71 {strides = array<i32>} : memref<16x128xf32, #tpu.memory_space<vmem>>, vector<1x128xf32>,
    %c3_i32 = arith.constant 3 : i32
    %74 = arith.addi %0, %c3_i32 : i32
    %75 = arith.index_cast %74 : i32 to index
    %76 = memref.load %arg1[%75] : memref<64xi32, #tpu.memory_space<smem>>
    %77 = arith.index_cast %76 : i32 to index
    %c0_42 = arith.constant 0 : index
    %78 = vector.load %arg22[%77, %c0_42] : memref<16x128xf32, #tpu.memory_space<vmem>>, vector<1x128xf32>
    %79 = arith.index_cast %c3_i32 : i32 to index
    %c0_43 = arith.constant 0 : index
    %80 = vector.load %arg24[%79, %c0_43] : memref<16x128xf32, #tpu.memory_space<vmem>>, vector<1x128xf32>
    tpu.vector_store %arg24[%79, %c0_43], %78 {strides = array<i32>} : memref<16x128xf32, #tpu.memory_space<vmem>>, vector<1x128xf32>,
    %c4_i32 = arith.constant 4 : i32
    %81 = arith.addi %0, %c4_i32 : i32
    %82 = arith.index_cast %81 : i32 to index
    %83 = memref.load %arg1[%82] : memref<64xi32, #tpu.memory_space<smem>>
    %84 = arith.index_cast %83 : i32 to index
    %c0_44 = arith.constant 0 : index
    %85 = vector.load %arg22[%84, %c0_44] : memref<16x128xf32, #tpu.memory_space<vmem>>, vector<1x128xf32>
    %86 = arith.index_cast %c4_i32 : i32 to index
    %c0_45 = arith.constant 0 : index
    %87 = vector.load %arg24[%86, %c0_45] : memref<16x128xf32, #tpu.memory_space<vmem>>, vector<1x128xf32>
    tpu.vector_store %arg24[%86, %c0_45], %85 {strides = array<i32>} : memref<16x128xf32, #tpu.memory_space<vmem>>, vector<1x128xf32>,
    %c5_i32 = arith.constant 5 : i32
    %88 = arith.addi %0, %c5_i32 : i32
    %89 = arith.index_cast %88 : i32 to index
    %90 = memref.load %arg1[%89] : memref<64xi32, #tpu.memory_space<smem>>
    %91 = arith.index_cast %90 : i32 to index
    %c0_46 = arith.constant 0 : index
    %92 = vector.load %arg22[%91, %c0_46] : memref<16x128xf32, #tpu.memory_space<vmem>>, vector<1x128xf32>
    %93 = arith.index_cast %c5_i32 : i32 to index
    %c0_47 = arith.constant 0 : index
    %94 = vector.load %arg24[%93, %c0_47] : memref<16x128xf32, #tpu.memory_space<vmem>>, vector<1x128xf32>
    tpu.vector_store %arg24[%93, %c0_47], %92 {strides = array<i32>} : memref<16x128xf32, #tpu.memory_space<vmem>>, vector<1x128xf32>,
    %c6_i32 = arith.constant 6 : i32
    %95 = arith.addi %0, %c6_i32 : i32
    %96 = arith.index_cast %95 : i32 to index
    %97 = memref.load %arg1[%96] : memref<64xi32, #tpu.memory_space<smem>>
    %98 = arith.index_cast %97 : i32 to index
    %c0_48 = arith.constant 0 : index
    %99 = vector.load %arg22[%98, %c0_48] : memref<16x128xf32, #tpu.memory_space<vmem>>, vector<1x128xf32>
    %100 = arith.index_cast %c6_i32 : i32 to index
    %c0_49 = arith.constant 0 : index
    %101 = vector.load %arg24[%100, %c0_49] : memref<16x128xf32, #tpu.memory_space<vmem>>, vector<1x128xf32>
    tpu.vector_store %arg24[%100, %c0_49], %99 {strides = array<i32>} : memref<16x128xf32, #tpu.memory_space<vmem>>, vector<1x128xf32>,
    %c7_i32 = arith.constant 7 : i32
    %102 = arith.addi %0, %c7_i32 : i32
    %103 = arith.index_cast %102 : i32 to index
    %104 = memref.load %arg1[%103] : memref<64xi32, #tpu.memory_space<smem>>
    %105 = arith.index_cast %104 : i32 to index
    %c0_50 = arith.constant 0 : index
    %106 = vector.load %arg22[%105, %c0_50] : memref<16x128xf32, #tpu.memory_space<vmem>>, vector<1x128xf32>
    %107 = arith.index_cast %c7_i32 : i32 to index
    %c0_51 = arith.constant 0 : index
    %108 = vector.load %arg24[%107, %c0_51] : memref<16x128xf32, #tpu.memory_space<vmem>>, vector<1x128xf32>
    tpu.vector_store %arg24[%107, %c0_51], %106 {strides = array<i32>} : memref<16x128xf32, #tpu.memory_space<vmem>>, vector<1x128xf32>,
    %c8_i32 = arith.constant 8 : i32
    %109 = arith.addi %0, %c8_i32 : i32
    %110 = arith.index_cast %109 : i32 to index
    %111 = memref.load %arg1[%110] : memref<64xi32, #tpu.memory_space<smem>>
    %112 = arith.index_cast %111 : i32 to index
    %c0_52 = arith.constant 0 : index
    %113 = vector.load %arg22[%112, %c0_52] : memref<16x128xf32, #tpu.memory_space<vmem>>, vector<1x128xf32>
    %114 = arith.index_cast %c8_i32 : i32 to index
    %c0_53 = arith.constant 0 : index
    %115 = vector.load %arg24[%114, %c0_53] : memref<16x128xf32, #tpu.memory_space<vmem>>, vector<1x128xf32>
    tpu.vector_store %arg24[%114, %c0_53], %113 {strides = array<i32>} : memref<16x128xf32, #tpu.memory_space<vmem>>, vector<1x128xf32>,
    %c9_i32 = arith.constant 9 : i32
    %116 = arith.addi %0, %c9_i32 : i32
    %117 = arith.index_cast %116 : i32 to index
    %118 = memref.load %arg1[%117] : memref<64xi32, #tpu.memory_space<smem>>
    %119 = arith.index_cast %118 : i32 to index
    %c0_54 = arith.constant 0 : index
    %120 = vector.load %arg22[%119, %c0_54] : memref<16x128xf32, #tpu.memory_space<vmem>>, vector<1x128xf32>
    %121 = arith.index_cast %c9_i32 : i32 to index
    %c0_55 = arith.constant 0 : index
    %122 = vector.load %arg24[%121, %c0_55] : memref<16x128xf32, #tpu.memory_space<vmem>>, vector<1x128xf32>
    tpu.vector_store %arg24[%121, %c0_55], %120 {strides = array<i32>} : memref<16x128xf32, #tpu.memory_space<vmem>>, vector<1x128xf32>,
    %c10_i32 = arith.constant 10 : i32
    %123 = arith.addi %0, %c10_i32 : i32
    %124 = arith.index_cast %123 : i32 to index
    %125 = memref.load %arg1[%124] : memref<64xi32, #tpu.memory_space<smem>>
    %126 = arith.index_cast %125 : i32 to index
    %c0_56 = arith.constant 0 : index
    %127 = vector.load %arg22[%126, %c0_56] : memref<16x128xf32, #tpu.memory_space<vmem>>, vector<1x128xf32>
    %128 = arith.index_cast %c10_i32 : i32 to index
    %c0_57 = arith.constant 0 : index
    %129 = vector.load %arg24[%128, %c0_57] : memref<16x128xf32, #tpu.memory_space<vmem>>, vector<1x128xf32>
    tpu.vector_store %arg24[%128, %c0_57], %127 {strides = array<i32>} : memref<16x128xf32, #tpu.memory_space<vmem>>, vector<1x128xf32>,
    %c11_i32 = arith.constant 11 : i32
    %130 = arith.addi %0, %c11_i32 : i32
    %131 = arith.index_cast %130 : i32 to index
    %132 = memref.load %arg1[%131] : memref<64xi32, #tpu.memory_space<smem>>
    %133 = arith.index_cast %132 : i32 to index
    %c0_58 = arith.constant 0 : index
    %134 = vector.load %arg22[%133, %c0_58] : memref<16x128xf32, #tpu.memory_space<vmem>>, vector<1x128xf32>
    %135 = arith.index_cast %c11_i32 : i32 to index
    %c0_59 = arith.constant 0 : index
    %136 = vector.load %arg24[%135, %c0_59] : memref<16x128xf32, #tpu.memory_space<vmem>>, vector<1x128xf32>
    tpu.vector_store %arg24[%135, %c0_59], %134 {strides = array<i32>} : memref<16x128xf32, #tpu.memory_space<vmem>>, vector<1x128xf32>,
    %c12_i32 = arith.constant 12 : i32
    %137 = arith.addi %0, %c12_i32 : i32
    %138 = arith.index_cast %137 : i32 to index
    %139 = memref.load %arg1[%138] : memref<64xi32, #tpu.memory_space<smem>>
    %140 = arith.index_cast %139 : i32 to index
    %c0_60 = arith.constant 0 : index
    %141 = vector.load %arg22[%140, %c0_60] : memref<16x128xf32, #tpu.memory_space<vmem>>, vector<1x128xf32>
    %142 = arith.index_cast %c12_i32 : i32 to index
    %c0_61 = arith.constant 0 : index
    %143 = vector.load %arg24[%142, %c0_61] : memref<16x128xf32, #tpu.memory_space<vmem>>, vector<1x128xf32>
    tpu.vector_store %arg24[%142, %c0_61], %141 {strides = array<i32>} : memref<16x128xf32, #tpu.memory_space<vmem>>, vector<1x128xf32>,
    %c13_i32 = arith.constant 13 : i32
    %144 = arith.addi %0, %c13_i32 : i32
    %145 = arith.index_cast %144 : i32 to index
    %146 = memref.load %arg1[%145] : memref<64xi32, #tpu.memory_space<smem>>
    %147 = arith.index_cast %146 : i32 to index
    %c0_62 = arith.constant 0 : index
    %148 = vector.load %arg22[%147, %c0_62] : memref<16x128xf32, #tpu.memory_space<vmem>>, vector<1x128xf32>
    %149 = arith.index_cast %c13_i32 : i32 to index
    %c0_63 = arith.constant 0 : index
    %150 = vector.load %arg24[%149, %c0_63] : memref<16x128xf32, #tpu.memory_space<vmem>>, vector<1x128xf32>
    tpu.vector_store %arg24[%149, %c0_63], %148 {strides = array<i32>} : memref<16x128xf32, #tpu.memory_space<vmem>>, vector<1x128xf32>,
    %c14_i32 = arith.constant 14 : i32
    %151 = arith.addi %0, %c14_i32 : i32
    %152 = arith.index_cast %151 : i32 to index
    %153 = memref.load %arg1[%152] : memref<64xi32, #tpu.memory_space<smem>>
    %154 = arith.index_cast %153 : i32 to index
    %c0_64 = arith.constant 0 : index
    %155 = vector.load %arg22[%154, %c0_64] : memref<16x128xf32, #tpu.memory_space<vmem>>, vector<1x128xf32>
    %156 = arith.index_cast %c14_i32 : i32 to index
    %c0_65 = arith.constant 0 : index
    %157 = vector.load %arg24[%156, %c0_65] : memref<16x128xf32, #tpu.memory_space<vmem>>, vector<1x128xf32>
    tpu.vector_store %arg24[%156, %c0_65], %155 {strides = array<i32>} : memref<16x128xf32, #tpu.memory_space<vmem>>, vector<1x128xf32>,
    %c15_i32 = arith.constant 15 : i32
    %158 = arith.addi %0, %c15_i32 : i32
    %159 = arith.index_cast %158 : i32 to index
    %160 = memref.load %arg1[%159] : memref<64xi32, #tpu.memory_space<smem>>
    %161 = arith.index_cast %160 : i32 to index
    %c0_66 = arith.constant 0 : index
    %162 = vector.load %arg22[%161, %c0_66] : memref<16x128xf32, #tpu.memory_space<vmem>>, vector<1x128xf32>
    %163 = arith.index_cast %c15_i32 : i32 to index
    %c0_67 = arith.constant 0 : index
    %164 = vector.load %arg24[%163, %c0_67] : memref<16x128xf32, #tpu.memory_space<vmem>>, vector<1x128xf32>
    tpu.vector_store %arg24[%163, %c0_67], %162 {strides = array<i32>} : memref<16x128xf32, #tpu.memory_space<vmem>>, vector<1x128xf32>,
    %c16_i32_68 = arith.constant 16 : i32
    %c0_69 = arith.constant 0 : index
    %c0_70 = arith.constant 0 : index
    %165 = vector.load %arg24[%c0_69, %c0_70] : memref<16x128xf32, #tpu.memory_space<vmem>>, vector<16x128xf32>
    %166 = arith.mulf %165, %27 : vector<16x128xf32>
    %167 = arith.addf %166, %33 : vector<16x128xf32>
    %c0_71 = arith.constant 0 : index
    %c0_72 = arith.constant 0 : index
    %168 = vector.load %arg24[%c0_71, %c0_72] : memref<16x128xf32, #tpu.memory_space<vmem>>, vector<16x128xf32>
    tpu.vector_store %arg24[%c0_71, %c0_72], %167 {strides = array<i32>} : memref<16x128xf32, #tpu.memory_space<vmem>>, vector<16x128xf32>,
    %c0_i32_73 = arith.constant 0 : i32
    %169 = arith.addi %0, %c0_i32_73 : i32
    %170 = arith.index_cast %169 : i32 to index
    %171 = memref.load %arg2[%170] : memref<64xi32, #tpu.memory_space<smem>>
    %c50_i32 = arith.constant 50 : i32
    %172 = arith.cmpi slt, %169, %c50_i32 : i32
    %cst_74 = arith.constant 1.000000e+00 : f32
    %cst_75 = arith.constant 0.000000e+00 : f32
    %173 = arith.select %172, %cst_74, %cst_75 : f32
    %174 = arith.index_cast %171 : i32 to index
    %c0_76 = arith.constant 0 : index
    %175 = vector.load %arg23[%174, %c0_76] : memref<16x128xf32, #tpu.memory_space<vmem>>, vector<1x128xf32>
    %176 = arith.index_cast %c0_i32_73 : i32 to index
    %c0_77 = arith.constant 0 : index
    %177 = vector.load %arg24[%176, %c0_77] : memref<16x128xf32, #tpu.memory_space<vmem>>, vector<1x128xf32>
    %178 = vector.broadcast %173 : f32 to vector<1x128xf32>
    %179 = arith.mulf %178, %177 : vector<1x128xf32>
    %180 = arith.addf %175, %179 : vector<1x128xf32>
    %181 = arith.index_cast %171 : i32 to index
    %c0_78 = arith.constant 0 : index
    %182 = vector.load %arg23[%181, %c0_78] : memref<16x128xf32, #tpu.memory_space<vmem>>, vector<1x128xf32>
    tpu.vector_store %arg23[%181, %c0_78], %180 {strides = array<i32>} : memref<16x128xf32, #tpu.memory_space<vmem>>, vector<1x128xf32>,
    %c1_i32_79 = arith.constant 1 : i32
    %183 = arith.addi %0, %c1_i32_79 : i32
    %184 = arith.index_cast %183 : i32 to index
    %185 = memref.load %arg2[%184] : memref<64xi32, #tpu.memory_space<smem>>
    %c50_i32_80 = arith.constant 50 : i32
    %186 = arith.cmpi slt, %183, %c50_i32_80 : i32
    %cst_81 = arith.constant 1.000000e+00 : f32
    %cst_82 = arith.constant 0.000000e+00 : f32
    %187 = arith.select %186, %cst_81, %cst_82 : f32
    %188 = arith.index_cast %185 : i32 to index
    %c0_83 = arith.constant 0 : index
    %189 = vector.load %arg23[%188, %c0_83] : memref<16x128xf32, #tpu.memory_space<vmem>>, vector<1x128xf32>
    %190 = arith.index_cast %c1_i32_79 : i32 to index
    %c0_84 = arith.constant 0 : index
    %191 = vector.load %arg24[%190, %c0_84] : memref<16x128xf32, #tpu.memory_space<vmem>>, vector<1x128xf32>
    %192 = vector.broadcast %187 : f32 to vector<1x128xf32>
    %193 = arith.mulf %192, %191 : vector<1x128xf32>
    %194 = arith.addf %189, %193 : vector<1x128xf32>
    %195 = arith.index_cast %185 : i32 to index
    %c0_85 = arith.constant 0 : index
    %196 = vector.load %arg23[%195, %c0_85] : memref<16x128xf32, #tpu.memory_space<vmem>>, vector<1x128xf32>
    tpu.vector_store %arg23[%195, %c0_85], %194 {strides = array<i32>} : memref<16x128xf32, #tpu.memory_space<vmem>>, vector<1x128xf32>,
    %c2_i32_86 = arith.constant 2 : i32
    %197 = arith.addi %0, %c2_i32_86 : i32
    %198 = arith.index_cast %197 : i32 to index
    %199 = memref.load %arg2[%198] : memref<64xi32, #tpu.memory_space<smem>>
    %c50_i32_87 = arith.constant 50 : i32
    %200 = arith.cmpi slt, %197, %c50_i32_87 : i32
    %cst_88 = arith.constant 1.000000e+00 : f32
    %cst_89 = arith.constant 0.000000e+00 : f32
    %201 = arith.select %200, %cst_88, %cst_89 : f32
    %202 = arith.index_cast %199 : i32 to index
    %c0_90 = arith.constant 0 : index
    %203 = vector.load %arg23[%202, %c0_90] : memref<16x128xf32, #tpu.memory_space<vmem>>, vector<1x128xf32>
    %204 = arith.index_cast %c2_i32_86 : i32 to index
    %c0_91 = arith.constant 0 : index
    %205 = vector.load %arg24[%204, %c0_91] : memref<16x128xf32, #tpu.memory_space<vmem>>, vector<1x128xf32>
    %206 = vector.broadcast %201 : f32 to vector<1x128xf32>
    %207 = arith.mulf %206, %205 : vector<1x128xf32>
    %208 = arith.addf %203, %207 : vector<1x128xf32>
    %209 = arith.index_cast %199 : i32 to index
    %c0_92 = arith.constant 0 : index
    %210 = vector.load %arg23[%209, %c0_92] : memref<16x128xf32, #tpu.memory_space<vmem>>, vector<1x128xf32>
    tpu.vector_store %arg23[%209, %c0_92], %208 {strides = array<i32>} : memref<16x128xf32, #tpu.memory_space<vmem>>, vector<1x128xf32>,
    %c3_i32_93 = arith.constant 3 : i32
    %211 = arith.addi %0, %c3_i32_93 : i32
    %212 = arith.index_cast %211 : i32 to index
    %213 = memref.load %arg2[%212] : memref<64xi32, #tpu.memory_space<smem>>
    %c50_i32_94 = arith.constant 50 : i32
    %214 = arith.cmpi slt, %211, %c50_i32_94 : i32
    %cst_95 = arith.constant 1.000000e+00 : f32
    %cst_96 = arith.constant 0.000000e+00 : f32
    %215 = arith.select %214, %cst_95, %cst_96 : f32
    %216 = arith.index_cast %213 : i32 to index
    %c0_97 = arith.constant 0 : index
    %217 = vector.load %arg23[%216, %c0_97] : memref<16x128xf32, #tpu.memory_space<vmem>>, vector<1x128xf32>
    %218 = arith.index_cast %c3_i32_93 : i32 to index
    %c0_98 = arith.constant 0 : index
    %219 = vector.load %arg24[%218, %c0_98] : memref<16x128xf32, #tpu.memory_space<vmem>>, vector<1x128xf32>
    %220 = vector.broadcast %215 : f32 to vector<1x128xf32>
    %221 = arith.mulf %220, %219 : vector<1x128xf32>
    %222 = arith.addf %217, %221 : vector<1x128xf32>
    %223 = arith.index_cast %213 : i32 to index
    %c0_99 = arith.constant 0 : index
    %224 = vector.load %arg23[%223, %c0_99] : memref<16x128xf32, #tpu.memory_space<vmem>>, vector<1x128xf32>
    tpu.vector_store %arg23[%223, %c0_99], %222 {strides = array<i32>} : memref<16x128xf32, #tpu.memory_space<vmem>>, vector<1x128xf32>,
    %c4_i32_100 = arith.constant 4 : i32
    %225 = arith.addi %0, %c4_i32_100 : i32
    %226 = arith.index_cast %225 : i32 to index
    %227 = memref.load %arg2[%226] : memref<64xi32, #tpu.memory_space<smem>>
    %c50_i32_101 = arith.constant 50 : i32
    %228 = arith.cmpi slt, %225, %c50_i32_101 : i32
    %cst_102 = arith.constant 1.000000e+00 : f32
    %cst_103 = arith.constant 0.000000e+00 : f32
    %229 = arith.select %228, %cst_102, %cst_103 : f32
    %230 = arith.index_cast %227 : i32 to index
    %c0_104 = arith.constant 0 : index
    %231 = vector.load %arg23[%230, %c0_104] : memref<16x128xf32, #tpu.memory_space<vmem>>, vector<1x128xf32>
    %232 = arith.index_cast %c4_i32_100 : i32 to index
    %c0_105 = arith.constant 0 : index
    %233 = vector.load %arg24[%232, %c0_105] : memref<16x128xf32, #tpu.memory_space<vmem>>, vector<1x128xf32>
    %234 = vector.broadcast %229 : f32 to vector<1x128xf32>
    %235 = arith.mulf %234, %233 : vector<1x128xf32>
    %236 = arith.addf %231, %235 : vector<1x128xf32>
    %237 = arith.index_cast %227 : i32 to index
    %c0_106 = arith.constant 0 : index
    %238 = vector.load %arg23[%237, %c0_106] : memref<16x128xf32, #tpu.memory_space<vmem>>, vector<1x128xf32>
    tpu.vector_store %arg23[%237, %c0_106], %236 {strides = array<i32>} : memref<16x128xf32, #tpu.memory_space<vmem>>, vector<1x128xf32>,
    %c5_i32_107 = arith.constant 5 : i32
    %239 = arith.addi %0, %c5_i32_107 : i32
    %240 = arith.index_cast %239 : i32 to index
    %241 = memref.load %arg2[%240] : memref<64xi32, #tpu.memory_space<smem>>
    %c50_i32_108 = arith.constant 50 : i32
    %242 = arith.cmpi slt, %239, %c50_i32_108 : i32
    %cst_109 = arith.constant 1.000000e+00 : f32
    %cst_110 = arith.constant 0.000000e+00 : f32
    %243 = arith.select %242, %cst_109, %cst_110 : f32
    %244 = arith.index_cast %241 : i32 to index
    %c0_111 = arith.constant 0 : index
    %245 = vector.load %arg23[%244, %c0_111] : memref<16x128xf32, #tpu.memory_space<vmem>>, vector<1x128xf32>
    %246 = arith.index_cast %c5_i32_107 : i32 to index
    %c0_112 = arith.constant 0 : index
    %247 = vector.load %arg24[%246, %c0_112] : memref<16x128xf32, #tpu.memory_space<vmem>>, vector<1x128xf32>
    %248 = vector.broadcast %243 : f32 to vector<1x128xf32>
    %249 = arith.mulf %248, %247 : vector<1x128xf32>
    %250 = arith.addf %245, %249 : vector<1x128xf32>
    %251 = arith.index_cast %241 : i32 to index
    %c0_113 = arith.constant 0 : index
    %252 = vector.load %arg23[%251, %c0_113] : memref<16x128xf32, #tpu.memory_space<vmem>>, vector<1x128xf32>
    tpu.vector_store %arg23[%251, %c0_113], %250 {strides = array<i32>} : memref<16x128xf32, #tpu.memory_space<vmem>>, vector<1x128xf32>,
    %c6_i32_114 = arith.constant 6 : i32
    %253 = arith.addi %0, %c6_i32_114 : i32
    %254 = arith.index_cast %253 : i32 to index
    %255 = memref.load %arg2[%254] : memref<64xi32, #tpu.memory_space<smem>>
    %c50_i32_115 = arith.constant 50 : i32
    %256 = arith.cmpi slt, %253, %c50_i32_115 : i32
    %cst_116 = arith.constant 1.000000e+00 : f32
    %cst_117 = arith.constant 0.000000e+00 : f32
    %257 = arith.select %256, %cst_116, %cst_117 : f32
    %258 = arith.index_cast %255 : i32 to index
    %c0_118 = arith.constant 0 : index
    %259 = vector.load %arg23[%258, %c0_118] : memref<16x128xf32, #tpu.memory_space<vmem>>, vector<1x128xf32>
    %260 = arith.index_cast %c6_i32_114 : i32 to index
    %c0_119 = arith.constant 0 : index
    %261 = vector.load %arg24[%260, %c0_119] : memref<16x128xf32, #tpu.memory_space<vmem>>, vector<1x128xf32>
    %262 = vector.broadcast %257 : f32 to vector<1x128xf32>
    %263 = arith.mulf %262, %261 : vector<1x128xf32>
    %264 = arith.addf %259, %263 : vector<1x128xf32>
    %265 = arith.index_cast %255 : i32 to index
    %c0_120 = arith.constant 0 : index
    %266 = vector.load %arg23[%265, %c0_120] : memref<16x128xf32, #tpu.memory_space<vmem>>, vector<1x128xf32>
    tpu.vector_store %arg23[%265, %c0_120], %264 {strides = array<i32>} : memref<16x128xf32, #tpu.memory_space<vmem>>, vector<1x128xf32>,
    %c7_i32_121 = arith.constant 7 : i32
    %267 = arith.addi %0, %c7_i32_121 : i32
    %268 = arith.index_cast %267 : i32 to index
    %269 = memref.load %arg2[%268] : memref<64xi32, #tpu.memory_space<smem>>
    %c50_i32_122 = arith.constant 50 : i32
    %270 = arith.cmpi slt, %267, %c50_i32_122 : i32
    %cst_123 = arith.constant 1.000000e+00 : f32
    %cst_124 = arith.constant 0.000000e+00 : f32
    %271 = arith.select %270, %cst_123, %cst_124 : f32
    %272 = arith.index_cast %269 : i32 to index
    %c0_125 = arith.constant 0 : index
    %273 = vector.load %arg23[%272, %c0_125] : memref<16x128xf32, #tpu.memory_space<vmem>>, vector<1x128xf32>
    %274 = arith.index_cast %c7_i32_121 : i32 to index
    %c0_126 = arith.constant 0 : index
    %275 = vector.load %arg24[%274, %c0_126] : memref<16x128xf32, #tpu.memory_space<vmem>>, vector<1x128xf32>
    %276 = vector.broadcast %271 : f32 to vector<1x128xf32>
    %277 = arith.mulf %276, %275 : vector<1x128xf32>
    %278 = arith.addf %273, %277 : vector<1x128xf32>
    %279 = arith.index_cast %269 : i32 to index
    %c0_127 = arith.constant 0 : index
    %280 = vector.load %arg23[%279, %c0_127] : memref<16x128xf32, #tpu.memory_space<vmem>>, vector<1x128xf32>
    tpu.vector_store %arg23[%279, %c0_127], %278 {strides = array<i32>} : memref<16x128xf32, #tpu.memory_space<vmem>>, vector<1x128xf32>,
    %c8_i32_128 = arith.constant 8 : i32
    %281 = arith.addi %0, %c8_i32_128 : i32
    %282 = arith.index_cast %281 : i32 to index
    %283 = memref.load %arg2[%282] : memref<64xi32, #tpu.memory_space<smem>>
    %c50_i32_129 = arith.constant 50 : i32
    %284 = arith.cmpi slt, %281, %c50_i32_129 : i32
    %cst_130 = arith.constant 1.000000e+00 : f32
    %cst_131 = arith.constant 0.000000e+00 : f32
    %285 = arith.select %284, %cst_130, %cst_131 : f32
    %286 = arith.index_cast %283 : i32 to index
    %c0_132 = arith.constant 0 : index
    %287 = vector.load %arg23[%286, %c0_132] : memref<16x128xf32, #tpu.memory_space<vmem>>, vector<1x128xf32>
    %288 = arith.index_cast %c8_i32_128 : i32 to index
    %c0_133 = arith.constant 0 : index
    %289 = vector.load %arg24[%288, %c0_133] : memref<16x128xf32, #tpu.memory_space<vmem>>, vector<1x128xf32>
    %290 = vector.broadcast %285 : f32 to vector<1x128xf32>
    %291 = arith.mulf %290, %289 : vector<1x128xf32>
    %292 = arith.addf %287, %291 : vector<1x128xf32>
    %293 = arith.index_cast %283 : i32 to index
    %c0_134 = arith.constant 0 : index
    %294 = vector.load %arg23[%293, %c0_134] : memref<16x128xf32, #tpu.memory_space<vmem>>, vector<1x128xf32>
    tpu.vector_store %arg23[%293, %c0_134], %292 {strides = array<i32>} : memref<16x128xf32, #tpu.memory_space<vmem>>, vector<1x128xf32>,
    %c9_i32_135 = arith.constant 9 : i32
    %295 = arith.addi %0, %c9_i32_135 : i32
    %296 = arith.index_cast %295 : i32 to index
    %297 = memref.load %arg2[%296] : memref<64xi32, #tpu.memory_space<smem>>
    %c50_i32_136 = arith.constant 50 : i32
    %298 = arith.cmpi slt, %295, %c50_i32_136 : i32
    %cst_137 = arith.constant 1.000000e+00 : f32
    %cst_138 = arith.constant 0.000000e+00 : f32
    %299 = arith.select %298, %cst_137, %cst_138 : f32
    %300 = arith.index_cast %297 : i32 to index
    %c0_139 = arith.constant 0 : index
    %301 = vector.load %arg23[%300, %c0_139] : memref<16x128xf32, #tpu.memory_space<vmem>>, vector<1x128xf32>
    %302 = arith.index_cast %c9_i32_135 : i32 to index
    %c0_140 = arith.constant 0 : index
    %303 = vector.load %arg24[%302, %c0_140] : memref<16x128xf32, #tpu.memory_space<vmem>>, vector<1x128xf32>
    %304 = vector.broadcast %299 : f32 to vector<1x128xf32>
    %305 = arith.mulf %304, %303 : vector<1x128xf32>
    %306 = arith.addf %301, %305 : vector<1x128xf32>
    %307 = arith.index_cast %297 : i32 to index
    %c0_141 = arith.constant 0 : index
    %308 = vector.load %arg23[%307, %c0_141] : memref<16x128xf32, #tpu.memory_space<vmem>>, vector<1x128xf32>
    tpu.vector_store %arg23[%307, %c0_141], %306 {strides = array<i32>} : memref<16x128xf32, #tpu.memory_space<vmem>>, vector<1x128xf32>,
    %c10_i32_142 = arith.constant 10 : i32
    %309 = arith.addi %0, %c10_i32_142 : i32
    %310 = arith.index_cast %309 : i32 to index
    %311 = memref.load %arg2[%310] : memref<64xi32, #tpu.memory_space<smem>>
    %c50_i32_143 = arith.constant 50 : i32
    %312 = arith.cmpi slt, %309, %c50_i32_143 : i32
    %cst_144 = arith.constant 1.000000e+00 : f32
    %cst_145 = arith.constant 0.000000e+00 : f32
    %313 = arith.select %312, %cst_144, %cst_145 : f32
    %314 = arith.index_cast %311 : i32 to index
    %c0_146 = arith.constant 0 : index
    %315 = vector.load %arg23[%314, %c0_146] : memref<16x128xf32, #tpu.memory_space<vmem>>, vector<1x128xf32>
    %316 = arith.index_cast %c10_i32_142 : i32 to index
    %c0_147 = arith.constant 0 : index
    %317 = vector.load %arg24[%316, %c0_147] : memref<16x128xf32, #tpu.memory_space<vmem>>, vector<1x128xf32>
    %318 = vector.broadcast %313 : f32 to vector<1x128xf32>
    %319 = arith.mulf %318, %317 : vector<1x128xf32>
    %320 = arith.addf %315, %319 : vector<1x128xf32>
    %321 = arith.index_cast %311 : i32 to index
    %c0_148 = arith.constant 0 : index
    %322 = vector.load %arg23[%321, %c0_148] : memref<16x128xf32, #tpu.memory_space<vmem>>, vector<1x128xf32>
    tpu.vector_store %arg23[%321, %c0_148], %320 {strides = array<i32>} : memref<16x128xf32, #tpu.memory_space<vmem>>, vector<1x128xf32>,
    %c11_i32_149 = arith.constant 11 : i32
    %323 = arith.addi %0, %c11_i32_149 : i32
    %324 = arith.index_cast %323 : i32 to index
    %325 = memref.load %arg2[%324] : memref<64xi32, #tpu.memory_space<smem>>
    %c50_i32_150 = arith.constant 50 : i32
    %326 = arith.cmpi slt, %323, %c50_i32_150 : i32
    %cst_151 = arith.constant 1.000000e+00 : f32
    %cst_152 = arith.constant 0.000000e+00 : f32
    %327 = arith.select %326, %cst_151, %cst_152 : f32
    %328 = arith.index_cast %325 : i32 to index
    %c0_153 = arith.constant 0 : index
    %329 = vector.load %arg23[%328, %c0_153] : memref<16x128xf32, #tpu.memory_space<vmem>>, vector<1x128xf32>
    %330 = arith.index_cast %c11_i32_149 : i32 to index
    %c0_154 = arith.constant 0 : index
    %331 = vector.load %arg24[%330, %c0_154] : memref<16x128xf32, #tpu.memory_space<vmem>>, vector<1x128xf32>
    %332 = vector.broadcast %327 : f32 to vector<1x128xf32>
    %333 = arith.mulf %332, %331 : vector<1x128xf32>
    %334 = arith.addf %329, %333 : vector<1x128xf32>
    %335 = arith.index_cast %325 : i32 to index
    %c0_155 = arith.constant 0 : index
    %336 = vector.load %arg23[%335, %c0_155] : memref<16x128xf32, #tpu.memory_space<vmem>>, vector<1x128xf32>
    tpu.vector_store %arg23[%335, %c0_155], %334 {strides = array<i32>} : memref<16x128xf32, #tpu.memory_space<vmem>>, vector<1x128xf32>,
    %c12_i32_156 = arith.constant 12 : i32
    %337 = arith.addi %0, %c12_i32_156 : i32
    %338 = arith.index_cast %337 : i32 to index
    %339 = memref.load %arg2[%338] : memref<64xi32, #tpu.memory_space<smem>>
    %c50_i32_157 = arith.constant 50 : i32
    %340 = arith.cmpi slt, %337, %c50_i32_157 : i32
    %cst_158 = arith.constant 1.000000e+00 : f32
    %cst_159 = arith.constant 0.000000e+00 : f32
    %341 = arith.select %340, %cst_158, %cst_159 : f32
    %342 = arith.index_cast %339 : i32 to index
    %c0_160 = arith.constant 0 : index
    %343 = vector.load %arg23[%342, %c0_160] : memref<16x128xf32, #tpu.memory_space<vmem>>, vector<1x128xf32>
    %344 = arith.index_cast %c12_i32_156 : i32 to index
    %c0_161 = arith.constant 0 : index
    %345 = vector.load %arg24[%344, %c0_161] : memref<16x128xf32, #tpu.memory_space<vmem>>, vector<1x128xf32>
    %346 = vector.broadcast %341 : f32 to vector<1x128xf32>
    %347 = arith.mulf %346, %345 : vector<1x128xf32>
    %348 = arith.addf %343, %347 : vector<1x128xf32>
    %349 = arith.index_cast %339 : i32 to index
    %c0_162 = arith.constant 0 : index
    %350 = vector.load %arg23[%349, %c0_162] : memref<16x128xf32, #tpu.memory_space<vmem>>, vector<1x128xf32>
    tpu.vector_store %arg23[%349, %c0_162], %348 {strides = array<i32>} : memref<16x128xf32, #tpu.memory_space<vmem>>, vector<1x128xf32>,
    %c13_i32_163 = arith.constant 13 : i32
    %351 = arith.addi %0, %c13_i32_163 : i32
    %352 = arith.index_cast %351 : i32 to index
    %353 = memref.load %arg2[%352] : memref<64xi32, #tpu.memory_space<smem>>
    %c50_i32_164 = arith.constant 50 : i32
    %354 = arith.cmpi slt, %351, %c50_i32_164 : i32
    %cst_165 = arith.constant 1.000000e+00 : f32
    %cst_166 = arith.constant 0.000000e+00 : f32
    %355 = arith.select %354, %cst_165, %cst_166 : f32
    %356 = arith.index_cast %353 : i32 to index
    %c0_167 = arith.constant 0 : index
    %357 = vector.load %arg23[%356, %c0_167] : memref<16x128xf32, #tpu.memory_space<vmem>>, vector<1x128xf32>
    %358 = arith.index_cast %c13_i32_163 : i32 to index
    %c0_168 = arith.constant 0 : index
    %359 = vector.load %arg24[%358, %c0_168] : memref<16x128xf32, #tpu.memory_space<vmem>>, vector<1x128xf32>
    %360 = vector.broadcast %355 : f32 to vector<1x128xf32>
    %361 = arith.mulf %360, %359 : vector<1x128xf32>
    %362 = arith.addf %357, %361 : vector<1x128xf32>
    %363 = arith.index_cast %353 : i32 to index
    %c0_169 = arith.constant 0 : index
    %364 = vector.load %arg23[%363, %c0_169] : memref<16x128xf32, #tpu.memory_space<vmem>>, vector<1x128xf32>
    tpu.vector_store %arg23[%363, %c0_169], %362 {strides = array<i32>} : memref<16x128xf32, #tpu.memory_space<vmem>>, vector<1x128xf32>,
    %c14_i32_170 = arith.constant 14 : i32
    %365 = arith.addi %0, %c14_i32_170 : i32
    %366 = arith.index_cast %365 : i32 to index
    %367 = memref.load %arg2[%366] : memref<64xi32, #tpu.memory_space<smem>>
    %c50_i32_171 = arith.constant 50 : i32
    %368 = arith.cmpi slt, %365, %c50_i32_171 : i32
    %cst_172 = arith.constant 1.000000e+00 : f32
    %cst_173 = arith.constant 0.000000e+00 : f32
    %369 = arith.select %368, %cst_172, %cst_173 : f32
    %370 = arith.index_cast %367 : i32 to index
    %c0_174 = arith.constant 0 : index
    %371 = vector.load %arg23[%370, %c0_174] : memref<16x128xf32, #tpu.memory_space<vmem>>, vector<1x128xf32>
    %372 = arith.index_cast %c14_i32_170 : i32 to index
    %c0_175 = arith.constant 0 : index
    %373 = vector.load %arg24[%372, %c0_175] : memref<16x128xf32, #tpu.memory_space<vmem>>, vector<1x128xf32>
    %374 = vector.broadcast %369 : f32 to vector<1x128xf32>
    %375 = arith.mulf %374, %373 : vector<1x128xf32>
    %376 = arith.addf %371, %375 : vector<1x128xf32>
    %377 = arith.index_cast %367 : i32 to index
    %c0_176 = arith.constant 0 : index
    %378 = vector.load %arg23[%377, %c0_176] : memref<16x128xf32, #tpu.memory_space<vmem>>, vector<1x128xf32>
    tpu.vector_store %arg23[%377, %c0_176], %376 {strides = array<i32>} : memref<16x128xf32, #tpu.memory_space<vmem>>, vector<1x128xf32>,
    %c15_i32_177 = arith.constant 15 : i32
    %379 = arith.addi %0, %c15_i32_177 : i32
    %380 = arith.index_cast %379 : i32 to index
    %381 = memref.load %arg2[%380] : memref<64xi32, #tpu.memory_space<smem>>
    %c50_i32_178 = arith.constant 50 : i32
    %382 = arith.cmpi slt, %379, %c50_i32_178 : i32
    %cst_179 = arith.constant 1.000000e+00 : f32
    %cst_180 = arith.constant 0.000000e+00 : f32
    %383 = arith.select %382, %cst_179, %cst_180 : f32
    %384 = arith.index_cast %381 : i32 to index
    %c0_181 = arith.constant 0 : index
    %385 = vector.load %arg23[%384, %c0_181] : memref<16x128xf32, #tpu.memory_space<vmem>>, vector<1x128xf32>
    %386 = arith.index_cast %c15_i32_177 : i32 to index
    %c0_182 = arith.constant 0 : index
    %387 = vector.load %arg24[%386, %c0_182] : memref<16x128xf32, #tpu.memory_space<vmem>>, vector<1x128xf32>
    %388 = vector.broadcast %383 : f32 to vector<1x128xf32>
    %389 = arith.mulf %388, %387 : vector<1x128xf32>
    %390 = arith.addf %385, %389 : vector<1x128xf32>
    %391 = arith.index_cast %381 : i32 to index
    %c0_183 = arith.constant 0 : index
    %392 = vector.load %arg23[%391, %c0_183] : memref<16x128xf32, #tpu.memory_space<vmem>>, vector<1x128xf32>
    tpu.vector_store %arg23[%391, %c0_183], %390 {strides = array<i32>} : memref<16x128xf32, #tpu.memory_space<vmem>>, vector<1x128xf32>,
    %c16_i32_184 = arith.constant 16 : i32
    %c3_i32_185 = arith.constant 3 : i32
    %393 = arith.cmpi eq, %arg0, %c3_i32_185 : i32
    %394 = arith.extui %393 : i1 to i32
    %c0_i32_186 = arith.constant 0 : i32
    %395 = arith.cmpi ne, %394, %c0_i32_186 : i32
    scf.if %395 {
      %c0_187 = arith.constant 0 : index
      %c0_188 = arith.constant 0 : index
      %396 = vector.load %arg23[%c0_187, %c0_188] : memref<16x128xf32, #tpu.memory_space<vmem>>, vector<16x128xf32>
      %c0_189 = arith.constant 0 : index
      %c0_190 = arith.constant 0 : index
      %397 = vector.load %arg16[%c0_189, %c0_190] : memref<128x128xf32, #tpu.memory_space<vmem>>, vector<128x128xf32>
      %cst_191 = arith.constant dense<0.000000e+00> : vector<16x128xf32>
      %398 = tpu.matmul %396, %397, %cst_191 {dimension_numbers = #tpu.dot_dimension_numbers<[1], [0], [0], [1], [0, 0, 1, 1], [], []>} : vector<16x128xf32>, vector<128x128xf32>, vector<16x128xf32> -> vector<16x128xf32>
      %c0_192 = arith.constant 0 : index
      %c0_193 = arith.constant 0 : index
      %399 = vector.load %arg17[%c0_192, %c0_193] : memref<1x128xf32, #tpu.memory_space<vmem>>, vector<1x128xf32>
      %400 = vector.broadcast %399 : vector<1x128xf32> to vector<16x128xf32>
      %401 = arith.addf %398, %400 : vector<16x128xf32>
      %cst_194 = arith.constant 5.000000e-01 : f32
      %402 = vector.broadcast %cst_194 : f32 to vector<16x128xf32>
      %403 = arith.mulf %402, %401 : vector<16x128xf32>
      %cst_195 = arith.constant 1.400000e+01 : f32
      %404 = vector.broadcast %cst_195 : f32 to vector<16x128xf32>
      %405 = arith.cmpf ogt, %403, %404 : vector<16x128xf32>
      %cst_196 = arith.constant 1.400000e+01 : f32
      %406 = vector.broadcast %cst_196 : f32 to vector<16x128xf32>
      %407 = arith.minimumf %403, %406 : vector<16x128xf32>
      %408 = math.exp %407 : vector<16x128xf32>
      %cst_197 = arith.constant 1.000000e+00 : f32
      %409 = vector.broadcast %cst_197 : f32 to vector<16x128xf32>
      %410 = arith.addf %409, %408 : vector<16x128xf32>
      %411 = math.log %410 : vector<16x128xf32>
      %cst_198 = arith.constant 2.000000e+00 : f32
      %412 = vector.broadcast %cst_198 : f32 to vector<16x128xf32>
      %413 = arith.mulf %412, %411 : vector<16x128xf32>
      %414 = arith.select %405, %401, %413 : vector<16x128xi1>, vector<16x128xf32>
      %c0_199 = arith.constant 0 : index
      %c0_200 = arith.constant 0 : index
      %415 = vector.load %arg3[%c0_199, %c0_200] : memref<16x128xf32, #tpu.memory_space<vmem>>, vector<16x128xf32>
      %c0_201 = arith.constant 0 : index
      %c0_202 = arith.constant 0 : index
      %416 = vector.load %arg18[%c0_201, %c0_202] : memref<128x128xf32, #tpu.memory_space<vmem>>, vector<128x128xf32>
      %cst_203 = arith.constant dense<0.000000e+00> : vector<16x128xf32>
      %417 = tpu.matmul %414, %416, %cst_203 {dimension_numbers = #tpu.dot_dimension_numbers<[1], [0], [0], [1], [0, 0, 1, 1], [], []>} : vector<16x128xf32>, vector<128x128xf32>, vector<16x128xf32> -> vector<16x128xf32>
      %c0_204 = arith.constant 0 : index
      %c0_205 = arith.constant 0 : index
      %418 = vector.load %arg19[%c0_204, %c0_205] : memref<1x128xf32, #tpu.memory_space<vmem>>, vector<1x128xf32>
      %419 = vector.broadcast %418 : vector<1x128xf32> to vector<16x128xf32>
      %420 = arith.addf %417, %419 : vector<16x128xf32>
      %421 = arith.addf %415, %420 : vector<16x128xf32>
      %c0_206 = arith.constant 0 : index
      %c0_207 = arith.constant 0 : index
      %422 = vector.load %arg20[%c0_206, %c0_207] : memref<16x128xf32, #tpu.memory_space<vmem>>, vector<16x128xf32>
      tpu.vector_store %arg20[%c0_206, %c0_207], %421 {strides = array<i32>} : memref<16x128xf32, #tpu.memory_space<vmem>>, vector<16x128xf32>,
    } else {
    }
    return
  }
  func.func @transform_0(%arg0: i32, %arg1: memref<64xi32, #tpu.memory_space<smem>>, %arg2: memref<64xi32, #tpu.memory_space<smem>>) -> (i32, i32) {
    %c0_i32 = arith.constant 0 : i32
    %c0_i32_0 = arith.constant 0 : i32
    %c0_i32_1 = arith.constant 0 : i32
    return %c0_i32, %c0_i32_0 : i32, i32
  }
  func.func @transform_1(%arg0: i32, %arg1: memref<64xi32, #tpu.memory_space<smem>>, %arg2: memref<64xi32, #tpu.memory_space<smem>>) -> (i32, i32) {
    %c0_i32 = arith.constant 0 : i32
    %c0_i32_0 = arith.constant 0 : i32
    return %arg0, %c0_i32 : i32, i32
  }
  func.func @transform_2(%arg0: i32, %arg1: memref<64xi32, #tpu.memory_space<smem>>, %arg2: memref<64xi32, #tpu.memory_space<smem>>) -> (i32, i32) {
    %c0_i32 = arith.constant 0 : i32
    %c0_i32_0 = arith.constant 0 : i32
    return %arg0, %c0_i32 : i32, i32
  }
  func.func @transform_3(%arg0: i32, %arg1: memref<64xi32, #tpu.memory_space<smem>>, %arg2: memref<64xi32, #tpu.memory_space<smem>>) -> (i32, i32) {
    %c0_i32 = arith.constant 0 : i32
    %c0_i32_0 = arith.constant 0 : i32
    %c0_i32_1 = arith.constant 0 : i32
    return %c0_i32, %c0_i32_0 : i32, i32
  }
  func.func @transform_4(%arg0: i32, %arg1: memref<64xi32, #tpu.memory_space<smem>>, %arg2: memref<64xi32, #tpu.memory_space<smem>>) -> (i32, i32) {
    %c0_i32 = arith.constant 0 : i32
    %c0_i32_0 = arith.constant 0 : i32
    %c0_i32_1 = arith.constant 0 : i32
    return %c0_i32, %c0_i32_0 : i32, i32
  }
  func.func @transform_5(%arg0: i32, %arg1: memref<64xi32, #tpu.memory_space<smem>>, %arg2: memref<64xi32, #tpu.memory_space<smem>>) -> (i32, i32) {
    %c0_i32 = arith.constant 0 : i32
    %c0_i32_0 = arith.constant 0 : i32
    %c0_i32_1 = arith.constant 0 : i32
    return %c0_i32, %c0_i32_0 : i32, i32
  }
  func.func @transform_6(%arg0: i32, %arg1: memref<64xi32, #tpu.memory_space<smem>>, %arg2: memref<64xi32, #tpu.memory_space<smem>>) -> (i32, i32) {
    %c0_i32 = arith.constant 0 : i32
    %c0_i32_0 = arith.constant 0 : i32
    %c0_i32_1 = arith.constant 0 : i32
    return %c0_i32, %c0_i32_0 : i32, i32
  }
  func.func @transform_7(%arg0: i32, %arg1: memref<64xi32, #tpu.memory_space<smem>>, %arg2: memref<64xi32, #tpu.memory_space<smem>>) -> (i32, i32) {
    %c0_i32 = arith.constant 0 : i32
    %c0_i32_0 = arith.constant 0 : i32
    %c0_i32_1 = arith.constant 0 : i32
    return %c0_i32, %c0_i32_0 : i32, i32
  }
  func.func @transform_8(%arg0: i32, %arg1: memref<64xi32, #tpu.memory_space<smem>>, %arg2: memref<64xi32, #tpu.memory_space<smem>>) -> (i32, i32) {
    %c0_i32 = arith.constant 0 : i32
    %c0_i32_0 = arith.constant 0 : i32
    %c0_i32_1 = arith.constant 0 : i32
    return %c0_i32, %c0_i32_0 : i32, i32
  }
  func.func @transform_9(%arg0: i32, %arg1: memref<64xi32, #tpu.memory_space<smem>>, %arg2: memref<64xi32, #tpu.memory_space<smem>>) -> (i32, i32) {
    %c0_i32 = arith.constant 0 : i32
    %c0_i32_0 = arith.constant 0 : i32
    %c0_i32_1 = arith.constant 0 : i32
    return %c0_i32, %c0_i32_0 : i32, i32
  }
  func.func @transform_10(%arg0: i32, %arg1: memref<64xi32, #tpu.memory_space<smem>>, %arg2: memref<64xi32, #tpu.memory_space<smem>>) -> (i32, i32) {
    %c0_i32 = arith.constant 0 : i32
    %c0_i32_0 = arith.constant 0 : i32
    %c0_i32_1 = arith.constant 0 : i32
    return %c0_i32, %c0_i32_0 : i32, i32
  }
  func.func @transform_11(%arg0: i32, %arg1: memref<64xi32, #tpu.memory_space<smem>>, %arg2: memref<64xi32, #tpu.memory_space<smem>>) -> (i32, i32) {
    %c0_i32 = arith.constant 0 : i32
    %c0_i32_0 = arith.constant 0 : i32
    %c0_i32_1 = arith.constant 0 : i32
    return %c0_i32, %c0_i32_0 : i32, i32
  }
  func.func @transform_12(%arg0: i32, %arg1: memref<64xi32, #tpu.memory_space<smem>>, %arg2: memref<64xi32, #tpu.memory_space<smem>>) -> (i32, i32) {
    %c0_i32 = arith.constant 0 : i32
    %c0_i32_0 = arith.constant 0 : i32
    %c0_i32_1 = arith.constant 0 : i32
    return %c0_i32, %c0_i32_0 : i32, i32
  }
  func.func @transform_13(%arg0: i32, %arg1: memref<64xi32, #tpu.memory_space<smem>>, %arg2: memref<64xi32, #tpu.memory_space<smem>>) -> (i32, i32) {
    %c0_i32 = arith.constant 0 : i32
    %c0_i32_0 = arith.constant 0 : i32
    %c0_i32_1 = arith.constant 0 : i32
    return %c0_i32, %c0_i32_0 : i32, i32
  }
  func.func @transform_14(%arg0: i32, %arg1: memref<64xi32, #tpu.memory_space<smem>>, %arg2: memref<64xi32, #tpu.memory_space<smem>>) -> (i32, i32) {
    %c0_i32 = arith.constant 0 : i32
    %c0_i32_0 = arith.constant 0 : i32
    %c0_i32_1 = arith.constant 0 : i32
    return %c0_i32, %c0_i32_0 : i32, i32
  }
  func.func @transform_15(%arg0: i32, %arg1: memref<64xi32, #tpu.memory_space<smem>>, %arg2: memref<64xi32, #tpu.memory_space<smem>>) -> (i32, i32) {
    %c0_i32 = arith.constant 0 : i32
    %c0_i32_0 = arith.constant 0 : i32
    %c0_i32_1 = arith.constant 0 : i32
    return %c0_i32, %c0_i32_0 : i32, i32
  }
  func.func @transform_16(%arg0: i32, %arg1: memref<64xi32, #tpu.memory_space<smem>>, %arg2: memref<64xi32, #tpu.memory_space<smem>>) -> (i32, i32) {
    %c0_i32 = arith.constant 0 : i32
    %c0_i32_0 = arith.constant 0 : i32
    %c0_i32_1 = arith.constant 0 : i32
    return %c0_i32, %c0_i32_0 : i32, i32
  }
  func.func @transform_17(%arg0: i32, %arg1: memref<64xi32, #tpu.memory_space<smem>>, %arg2: memref<64xi32, #tpu.memory_space<smem>>) -> (i32, i32) {
    %c0_i32 = arith.constant 0 : i32
    %c0_i32_0 = arith.constant 0 : i32
    %c0_i32_1 = arith.constant 0 : i32
    return %c0_i32, %c0_i32_0 : i32, i32
  }
  func.func @transform_18(%arg0: i32, %arg1: memref<64xi32, #tpu.memory_space<smem>>, %arg2: memref<64xi32, #tpu.memory_space<smem>>) -> (i32, i32) {
    %c0_i32 = arith.constant 0 : i32
    %c0_i32_0 = arith.constant 0 : i32
    return %arg0, %c0_i32 : i32, i32
  }
}

</mosaic_0001>

<llo_original>
// kernel: multi_level_interaction.1
$region0: #{multi_level_interaction.1}
  #allocation0 [shape = 'u32[]', space=smem, size = 0x4, offset = 0x4, fixed_abs, tag = 'smem constant byte address 0x4 - core index']
  #allocation1 [shape = 'u32[144,128]{1,0:T(1,128)}', space=vmem, size = 0x12000, scoped, tag = 'internal scratch']
  #allocation2 [shape = 'f32[16,128]{1,0:T(8,128)}', space=vmem, size = 0x2000, scoped, tag = 'scratch operand']
  #allocation3 [shape = 'f32[16,128]{1,0:T(8,128)}', space=vmem, size = 0x2000, scoped, tag = 'scratch operand']
  #allocation4 [shape = 'f32[16,128]{1,0:T(8,128)}', space=vmem, size = 0x2000, scoped, tag = 'scratch operand']
  #allocation5 [shape = 's32[1]{0}', space=sflag, size = 0x4, scoped, tag = 'scoped memory for multi_level_interaction.1']
  #allocation6 [shape = 'u8[512]{0}', space=smem, size = 0x200, scoped, tag = 'prefetched SMEM operand 0']
  #allocation7 [shape = 'u8[512]{0}', space=smem, size = 0x200, scoped, tag = 'prefetched SMEM operand 1']
  %s0 = inlined_call_operand.vmem [shape: s32[64], index: 0, kind: input, shape index: {}]
  %s1 = inlined_call_operand.vmem [shape: s32[64], index: 1, kind: input, shape index: {}]
  %s2 = inlined_call_operand.vmem [shape: f32[16,128], index: 2, kind: input, shape index: {}]
  %s3 = inlined_call_operand.vmem [shape: f32[64,128], index: 3, kind: input, shape index: {}]
  %s4 = inlined_call_operand.vmem [shape: f32[64,128], index: 4, kind: input, shape index: {}]
  %s5 = inlined_call_operand.vmem [shape: f32[128,128], index: 5, kind: input, shape index: {}]
  %s6 = inlined_call_operand.vmem [shape: f32[1,128], index: 6, kind: input, shape index: {}]
  %s7 = inlined_call_operand.vmem [shape: f32[128,128], index: 7, kind: input, shape index: {}]
  %s8 = inlined_call_operand.vmem [shape: f32[1,128], index: 8, kind: input, shape index: {}]
  %s9 = inlined_call_operand.vmem [shape: f32[128,128], index: 9, kind: input, shape index: {}]
  %s10 = inlined_call_operand.vmem [shape: f32[1,128], index: 10, kind: input, shape index: {}]
  %s11 = inlined_call_operand.vmem [shape: f32[128,128], index: 11, kind: input, shape index: {}]
  %s12 = inlined_call_operand.vmem [shape: f32[1,128], index: 12, kind: input, shape index: {}]
  %s13 = inlined_call_operand.vmem [shape: f32[128,128], index: 13, kind: input, shape index: {}]
  %s14 = inlined_call_operand.vmem [shape: f32[1,128], index: 14, kind: input, shape index: {}]
  %s15 = inlined_call_operand.vmem [shape: f32[128,128], index: 15, kind: input, shape index: {}]
  %s16 = inlined_call_operand.vmem [shape: f32[1,128], index: 16, kind: input, shape index: {}]
  %s17 = inlined_call_operand.vmem [shape: f32[128,128], index: 17, kind: input, shape index: {}]
  %s18 = inlined_call_operand.vmem [shape: f32[1,128], index: 18, kind: input, shape index: {}]
  %s19 = inlined_call_operand.hbm [shape: f32[16,128], index: 19, kind: output, shape index: {0}]
  %s20 = inlined_call_operand.vmem [shape: f32[64,128], index: 20, kind: output, shape index: {1}]
  %21 = xla_tuple %s19, %s20
  %s22 = sld [smem:[#allocation0]]
  $region117: #{multi_level_interaction.1} parent=0
    _
  %s24 = ssub.s32 1, %s22
  %s25 = scalar_select 0, %s24, %s22
  %s26 = sshll.u32 %s0, 4
  %s27 = int_to_ptr.vmem [resolvable:$true] %s26
  %29 = dma.vmem_to_smem %s27, 16, [#allocation6], [#allocation5]
  %s30 = sshll.u32 %s1, 4
  %s31 = int_to_ptr.vmem [resolvable:$true] %s30
  %33 = dma.vmem_to_smem %s31, 16, [#allocation7], [#allocation5]
  %34 = dma.done [#allocation5], 32
  %35 = sfence
  $region1: #{multi_level_interaction.1} parent=0
    #allocation8 [shape = 'u8[8192]{0}', space=vmem, size = 0x2000, scoped, tag = 'output window, operand 0, single buffered']
    #allocation9 [shape = 's32[2]{0}', space=sflag, size = 0x8, scoped, tag = 'scoped memory for multi_level_interaction.1']
    %36 = vsyncpa [#allocation9], 0
    loop: start=0, step=1, limit=6
    $region2: #{multi_level_interaction.1} parent=1 // loop_pre_header
      _
    $region3: #{multi_level_interaction.1} parent=1 // loop_header
      %s38 = sphi 0, %s42
      %p39 = scmp.ge.s32.totalorder %s38, 6
      %s46 = sphi 0, %s46
      %s48 = sphi 0, %s46
      %s49 = sphi 0, %s48
      %s63 = sphi 0, %s49
      %s69 = sphi 0, %s71
      %s72 = sphi 0, %s69
      %s73 = sphi 0, %s72
      %s89 = sphi 0, %s73
      %s95 = sphi 0, %s97
      %s98 = sphi 0, %s95
      %s99 = sphi 0, %s98
      %s115 = sphi 0, %s99
      %s119 = sphi 0, %s119
      %s121 = sphi 0, %s119
      %s122 = sphi 0, %s121
      %s136 = sphi 0, %s122
      %s140 = sphi 0, %s140
      %s142 = sphi 0, %s140
      %s143 = sphi 0, %s142
      %s157 = sphi 0, %s143
      %s161 = sphi 0, %s161
      %s163 = sphi 0, %s161
      %s164 = sphi 0, %s163
      %s178 = sphi 0, %s164
      %s182 = sphi 0, %s182
      %s184 = sphi 0, %s182
      %s185 = sphi 0, %s184
      %s199 = sphi 0, %s185
      %s203 = sphi 0, %s203
      %s205 = sphi 0, %s203
      %s206 = sphi 0, %s205
      %s220 = sphi 0, %s206
      %s224 = sphi 0, %s224
      %s226 = sphi 0, %s224
      %s227 = sphi 0, %s226
      %s241 = sphi 0, %s227
      %s245 = sphi 0, %s245
      %s247 = sphi 0, %s245
      %s248 = sphi 0, %s247
      %s262 = sphi 0, %s248
      %s266 = sphi 0, %s266
      %s268 = sphi 0, %s266
      %s269 = sphi 0, %s268
      %s283 = sphi 0, %s269
      %s287 = sphi 0, %s287
      %s289 = sphi 0, %s287
      %s290 = sphi 0, %s289
      %s304 = sphi 0, %s290
      %s308 = sphi 0, %s308
      %s310 = sphi 0, %s308
      %s311 = sphi 0, %s310
      %s325 = sphi 0, %s311
      %s329 = sphi 0, %s329
      %s331 = sphi 0, %s329
      %s332 = sphi 0, %s331
      %s346 = sphi 0, %s332
      %s350 = sphi 0, %s350
      %s352 = sphi 0, %s350
      %s353 = sphi 0, %s352
      %s367 = sphi 0, %s353
      %s371 = sphi 0, %s371
      %s373 = sphi 0, %s371
      %s374 = sphi 0, %s373
      %s388 = sphi 0, %s374
      %s392 = sphi 0, %s392
      %s394 = sphi 0, %s392
      %s395 = sphi 0, %s394
      %s409 = sphi 0, %s395
      %s413 = sphi 0, %s413
      %s415 = sphi 0, %s413
      %s416 = sphi 0, %s415
      %s430 = sphi 0, %s416
      %s436 = sphi 0, %s438
      %s439 = sphi 0, %s436
      %s440 = sphi 0, %s439
      %s456 = sphi 0, %s440
    $region4: #{multi_level_interaction.1} parent=1 // loop_header_branch
      %41 = sbr.rel (%p39) target = $region8
    $region5: #{multi_level_interaction.1} parent=1 // loop_body
      %s43 = ssub.s32 %s38, 1
      %s44 = ssub.s32 %s38, 2
      %s45 = sadd.s32 %s38, 1
      %s47 = sadd.s32 %s46, 1
      %p50 = scmp.eq.s32.totalorder %s38, 3
      %p51 = scmp.ne.s32.totalorder %s46, %s48
      %p52 = scmp.eq.s32.totalorder %s38, 0
      %p53 = por %p51, %p52
      %p54 = scmp.ne.s32.totalorder %s46, %s48
      %p55 = scmp.eq.s32.totalorder %s43, 3
      %p56 = por %p54, %p55
      %p57 = scmp.ne.s32.totalorder %s48, %s49
      %p58 = scmp.eq.s32.totalorder %s43, 0
      %p59 = por %p57, %p58
      %p60 = scmp.ne.s32.totalorder %s48, %s49
      %p61 = scmp.eq.s32.totalorder %s44, 3
      %p62 = por %p60, %p61
      %p64 = scmp.ne.s32.totalorder %s49, %s63
      %p65 = scmp.eq.s32.totalorder %s44, 0
      %p66 = por %p64, %p65
      %s67 = ssub.s32 %s38, %s45
      %p68 = scmp.eq.s32.totalorder %s67, 0
      %s70 = sadd.s32 %s69, 1
      %s71 = scalar_select %p68, %s69, %s70
      %p74 = pneg %p68
      %p75 = scmp.eq.s32.totalorder %s38, 3
      %p76 = por %p74, %p75
      %p77 = scmp.ne.s32.totalorder %s69, %s72
      %p78 = scmp.eq.s32.totalorder %s38, 0
      %p79 = por %p77, %p78
      %p80 = scmp.ne.s32.totalorder %s69, %s72
      %p81 = scmp.eq.s32.totalorder %s43, 3
      %p82 = por %p80, %p81
      %p83 = scmp.ne.s32.totalorder %s72, %s73
      %p84 = scmp.eq.s32.totalorder %s43, 0
      %p85 = por %p83, %p84
      %p86 = scmp.ne.s32.totalorder %s72, %s73
      %p87 = scmp.eq.s32.totalorder %s44, 3
      %p88 = por %p86, %p87
      %p90 = scmp.ne.s32.totalorder %s73, %s89
      %p91 = scmp.eq.s32.totalorder %s44, 0
      %p92 = por %p90, %p91
      %s93 = ssub.s32 %s38, %s45
      %p94 = scmp.eq.s32.totalorder %s93, 0
      %s96 = sadd.s32 %s95, 1
      %s97 = scalar_select %p94, %s95, %s96
      %p100 = pneg %p94
      %p101 = scmp.eq.s32.totalorder %s38, 3
      %p102 = por %p100, %p101
      %p103 = scmp.ne.s32.totalorder %s95, %s98
      %p104 = scmp.eq.s32.totalorder %s38, 0
      %p105 = por %p103, %p104
      %p106 = scmp.ne.s32.totalorder %s95, %s98
      %p107 = scmp.eq.s32.totalorder %s43, 3
      %p108 = por %p106, %p107
      %p109 = scmp.ne.s32.totalorder %s98, %s99
      %p110 = scmp.eq.s32.totalorder %s43, 0
      %p111 = por %p109, %p110
      %p112 = scmp.ne.s32.totalorder %s98, %s99
      %p113 = scmp.eq.s32.totalorder %s44, 3
      %p114 = por %p112, %p113
      %p116 = scmp.ne.s32.totalorder %s99, %s115
      %p117 = scmp.eq.s32.totalorder %s44, 0
      %p118 = por %p116, %p117
      %s120 = sadd.s32 %s119, 1
      %p123 = scmp.eq.s32.totalorder %s38, 3
      %p124 = scmp.ne.s32.totalorder %s119, %s121
      %p125 = scmp.eq.s32.totalorder %s38, 0
      %p126 = por %p124, %p125
      %p127 = scmp.ne.s32.totalorder %s119, %s121
      %p128 = scmp.eq.s32.totalorder %s43, 3
      %p129 = por %p127, %p128
      %p130 = scmp.ne.s32.totalorder %s121, %s122
      %p131 = scmp.eq.s32.totalorder %s43, 0
      %p132 = por %p130, %p131
      %p133 = scmp.ne.s32.totalorder %s121, %s122
      %p134 = scmp.eq.s32.totalorder %s44, 3
      %p135 = por %p133, %p134
      %p137 = scmp.ne.s32.totalorder %s122, %s136
      %p138 = scmp.eq.s32.totalorder %s44, 0
      %p139 = por %p137, %p138
      %s141 = sadd.s32 %s140, 1
      %p144 = scmp.eq.s32.totalorder %s38, 3
      %p145 = scmp.ne.s32.totalorder %s140, %s142
      %p146 = scmp.eq.s32.totalorder %s38, 0
      %p147 = por %p145, %p146
      %p148 = scmp.ne.s32.totalorder %s140, %s142
      %p149 = scmp.eq.s32.totalorder %s43, 3
      %p150 = por %p148, %p149
      %p151 = scmp.ne.s32.totalorder %s142, %s143
      %p152 = scmp.eq.s32.totalorder %s43, 0
      %p153 = por %p151, %p152
      %p154 = scmp.ne.s32.totalorder %s142, %s143
      %p155 = scmp.eq.s32.totalorder %s44, 3
      %p156 = por %p154, %p155
      %p158 = scmp.ne.s32.totalorder %s143, %s157
      %p159 = scmp.eq.s32.totalorder %s44, 0
      %p160 = por %p158, %p159
      %s162 = sadd.s32 %s161, 1
      %p165 = scmp.eq.s32.totalorder %s38, 3
      %p166 = scmp.ne.s32.totalorder %s161, %s163
      %p167 = scmp.eq.s32.totalorder %s38, 0
      %p168 = por %p166, %p167
      %p169 = scmp.ne.s32.totalorder %s161, %s163
      %p170 = scmp.eq.s32.totalorder %s43, 3
      %p171 = por %p169, %p170
      %p172 = scmp.ne.s32.totalorder %s163, %s164
      %p173 = scmp.eq.s32.totalorder %s43, 0
      %p174 = por %p172, %p173
      %p175 = scmp.ne.s32.totalorder %s163, %s164
      %p176 = scmp.eq.s32.totalorder %s44, 3
      %p177 = por %p175, %p176
      %p179 = scmp.ne.s32.totalorder %s164, %s178
      %p180 = scmp.eq.s32.totalorder %s44, 0
      %p181 = por %p179, %p180
      %s183 = sadd.s32 %s182, 1
      %p186 = scmp.eq.s32.totalorder %s38, 3
      %p187 = scmp.ne.s32.totalorder %s182, %s184
      %p188 = scmp.eq.s32.totalorder %s38, 0
      %p189 = por %p187, %p188
      %p190 = scmp.ne.s32.totalorder %s182, %s184
      %p191 = scmp.eq.s32.totalorder %s43, 3
      %p192 = por %p190, %p191
      %p193 = scmp.ne.s32.totalorder %s184, %s185
      %p194 = scmp.eq.s32.totalorder %s43, 0
      %p195 = por %p193, %p194
      %p196 = scmp.ne.s32.totalorder %s184, %s185
      %p197 = scmp.eq.s32.totalorder %s44, 3
      %p198 = por %p196, %p197
      %p200 = scmp.ne.s32.totalorder %s185, %s199
      %p201 = scmp.eq.s32.totalorder %s44, 0
      %p202 = por %p200, %p201
      %s204 = sadd.s32 %s203, 1
      %p207 = scmp.eq.s32.totalorder %s38, 3
      %p208 = scmp.ne.s32.totalorder %s203, %s205
      %p209 = scmp.eq.s32.totalorder %s38, 0
      %p210 = por %p208, %p209
      %p211 = scmp.ne.s32.totalorder %s203, %s205
      %p212 = scmp.eq.s32.totalorder %s43, 3
      %p213 = por %p211, %p212
      %p214 = scmp.ne.s32.totalorder %s205, %s206
      %p215 = scmp.eq.s32.totalorder %s43, 0
      %p216 = por %p214, %p215
      %p217 = scmp.ne.s32.totalorder %s205, %s206
      %p218 = scmp.eq.s32.totalorder %s44, 3
      %p219 = por %p217, %p218
      %p221 = scmp.ne.s32.totalorder %s206, %s220
      %p222 = scmp.eq.s32.totalorder %s44, 0
      %p223 = por %p221, %p222
      %s225 = sadd.s32 %s224, 1
      %p228 = scmp.eq.s32.totalorder %s38, 3
      %p229 = scmp.ne.s32.totalorder %s224, %s226
      %p230 = scmp.eq.s32.totalorder %s38, 0
      %p231 = por %p229, %p230
      %p232 = scmp.ne.s32.totalorder %s224, %s226
      %p233 = scmp.eq.s32.totalorder %s43, 3
      %p234 = por %p232, %p233
      %p235 = scmp.ne.s32.totalorder %s226, %s227
      %p236 = scmp.eq.s32.totalorder %s43, 0
      %p237 = por %p235, %p236
      %p238 = scmp.ne.s32.totalorder %s226, %s227
      %p239 = scmp.eq.s32.totalorder %s44, 3
      %p240 = por %p238, %p239
      %p242 = scmp.ne.s32.totalorder %s227, %s241
      %p243 = scmp.eq.s32.totalorder %s44, 0
      %p244 = por %p242, %p243
      %s246 = sadd.s32 %s245, 1
      %p249 = scmp.eq.s32.totalorder %s38, 3
      %p250 = scmp.ne.s32.totalorder %s245, %s247
      %p251 = scmp.eq.s32.totalorder %s38, 0
      %p252 = por %p250, %p251
      %p253 = scmp.ne.s32.totalorder %s245, %s247
      %p254 = scmp.eq.s32.totalorder %s43, 3
      %p255 = por %p253, %p254
      %p256 = scmp.ne.s32.totalorder %s247, %s248
      %p257 = scmp.eq.s32.totalorder %s43, 0
      %p258 = por %p256, %p257
      %p259 = scmp.ne.s32.totalorder %s247, %s248
      %p260 = scmp.eq.s32.totalorder %s44, 3
      %p261 = por %p259, %p260
      %p263 = scmp.ne.s32.totalorder %s248, %s262
      %p264 = scmp.eq.s32.totalorder %s44, 0
      %p265 = por %p263, %p264
      %s267 = sadd.s32 %s266, 1
      %p270 = scmp.eq.s32.totalorder %s38, 3
      %p271 = scmp.ne.s32.totalorder %s266, %s268
      %p272 = scmp.eq.s32.totalorder %s38, 0
      %p273 = por %p271, %p272
      %p274 = scmp.ne.s32.totalorder %s266, %s268
      %p275 = scmp.eq.s32.totalorder %s43, 3
      %p276 = por %p274, %p275
      %p277 = scmp.ne.s32.totalorder %s268, %s269
      %p278 = scmp.eq.s32.totalorder %s43, 0
      %p279 = por %p277, %p278
      %p280 = scmp.ne.s32.totalorder %s268, %s269
      %p281 = scmp.eq.s32.totalorder %s44, 3
      %p282 = por %p280, %p281
      %p284 = scmp.ne.s32.totalorder %s269, %s283
      %p285 = scmp.eq.s32.totalorder %s44, 0
      %p286 = por %p284, %p285
      %s288 = sadd.s32 %s287, 1
      %p291 = scmp.eq.s32.totalorder %s38, 3
      %p292 = scmp.ne.s32.totalorder %s287, %s289
      %p293 = scmp.eq.s32.totalorder %s38, 0
      %p294 = por %p292, %p293
      %p295 = scmp.ne.s32.totalorder %s287, %s289
      %p296 = scmp.eq.s32.totalorder %s43, 3
      %p297 = por %p295, %p296
      %p298 = scmp.ne.s32.totalorder %s289, %s290
      %p299 = scmp.eq.s32.totalorder %s43, 0
      %p300 = por %p298, %p299
      %p301 = scmp.ne.s32.totalorder %s289, %s290
      %p302 = scmp.eq.s32.totalorder %s44, 3
      %p303 = por %p301, %p302
      %p305 = scmp.ne.s32.totalorder %s290, %s304
      %p306 = scmp.eq.s32.totalorder %s44, 0
      %p307 = por %p305, %p306
      %s309 = sadd.s32 %s308, 1
      %p312 = scmp.eq.s32.totalorder %s38, 3
      %p313 = scmp.ne.s32.totalorder %s308, %s310
      %p314 = scmp.eq.s32.totalorder %s38, 0
      %p315 = por %p313, %p314
      %p316 = scmp.ne.s32.totalorder %s308, %s310
      %p317 = scmp.eq.s32.totalorder %s43, 3
      %p318 = por %p316, %p317
      %p319 = scmp.ne.s32.totalorder %s310, %s311
      %p320 = scmp.eq.s32.totalorder %s43, 0
      %p321 = por %p319, %p320
      %p322 = scmp.ne.s32.totalorder %s310, %s311
      %p323 = scmp.eq.s32.totalorder %s44, 3
      %p324 = por %p322, %p323
      %p326 = scmp.ne.s32.totalorder %s311, %s325
      %p327 = scmp.eq.s32.totalorder %s44, 0
      %p328 = por %p326, %p327
      %s330 = sadd.s32 %s329, 1
      %p333 = scmp.eq.s32.totalorder %s38, 3
      %p334 = scmp.ne.s32.totalorder %s329, %s331
      %p335 = scmp.eq.s32.totalorder %s38, 0
      %p336 = por %p334, %p335
      %p337 = scmp.ne.s32.totalorder %s329, %s331
      %p338 = scmp.eq.s32.totalorder %s43, 3
      %p339 = por %p337, %p338
      %p340 = scmp.ne.s32.totalorder %s331, %s332
      %p341 = scmp.eq.s32.totalorder %s43, 0
      %p342 = por %p340, %p341
      %p343 = scmp.ne.s32.totalorder %s331, %s332
      %p344 = scmp.eq.s32.totalorder %s44, 3
      %p345 = por %p343, %p344
      %p347 = scmp.ne.s32.totalorder %s332, %s346
      %p348 = scmp.eq.s32.totalorder %s44, 0
      %p349 = por %p347, %p348
      %s351 = sadd.s32 %s350, 1
      %p354 = scmp.eq.s32.totalorder %s38, 3
      %p355 = scmp.ne.s32.totalorder %s350, %s352
      %p356 = scmp.eq.s32.totalorder %s38, 0
      %p357 = por %p355, %p356
      %p358 = scmp.ne.s32.totalorder %s350, %s352
      %p359 = scmp.eq.s32.totalorder %s43, 3
      %p360 = por %p358, %p359
      %p361 = scmp.ne.s32.totalorder %s352, %s353
      %p362 = scmp.eq.s32.totalorder %s43, 0
      %p363 = por %p361, %p362
      %p364 = scmp.ne.s32.totalorder %s352, %s353
      %p365 = scmp.eq.s32.totalorder %s44, 3
      %p366 = por %p364, %p365
      %p368 = scmp.ne.s32.totalorder %s353, %s367
      %p369 = scmp.eq.s32.totalorder %s44, 0
      %p370 = por %p368, %p369
      %s372 = sadd.s32 %s371, 1
      %p375 = scmp.eq.s32.totalorder %s38, 3
      %p376 = scmp.ne.s32.totalorder %s371, %s373
      %p377 = scmp.eq.s32.totalorder %s38, 0
      %p378 = por %p376, %p377
      %p379 = scmp.ne.s32.totalorder %s371, %s373
      %p380 = scmp.eq.s32.totalorder %s43, 3
      %p381 = por %p379, %p380
      %p382 = scmp.ne.s32.totalorder %s373, %s374
      %p383 = scmp.eq.s32.totalorder %s43, 0
      %p384 = por %p382, %p383
      %p385 = scmp.ne.s32.totalorder %s373, %s374
      %p386 = scmp.eq.s32.totalorder %s44, 3
      %p387 = por %p385, %p386
      %p389 = scmp.ne.s32.totalorder %s374, %s388
      %p390 = scmp.eq.s32.totalorder %s44, 0
      %p391 = por %p389, %p390
      %s393 = sadd.s32 %s392, 1
      %p396 = scmp.eq.s32.totalorder %s38, 3
      %p397 = scmp.ne.s32.totalorder %s392, %s394
      %p398 = scmp.eq.s32.totalorder %s38, 0
      %p399 = por %p397, %p398
      %p400 = scmp.ne.s32.totalorder %s392, %s394
      %p401 = scmp.eq.s32.totalorder %s43, 3
      %p402 = por %p400, %p401
      %p403 = scmp.ne.s32.totalorder %s394, %s395
      %p404 = scmp.eq.s32.totalorder %s43, 0
      %p405 = por %p403, %p404
      %p406 = scmp.ne.s32.totalorder %s394, %s395
      %p407 = scmp.eq.s32.totalorder %s44, 3
      %p408 = por %p406, %p407
      %p410 = scmp.ne.s32.totalorder %s395, %s409
      %p411 = scmp.eq.s32.totalorder %s44, 0
      %p412 = por %p410, %p411
      %s414 = sadd.s32 %s413, 1
      %p417 = scmp.eq.s32.totalorder %s38, 3
      %p418 = scmp.ne.s32.totalorder %s413, %s415
      %p419 = scmp.eq.s32.totalorder %s38, 0
      %p420 = por %p418, %p419
      %p421 = scmp.ne.s32.totalorder %s413, %s415
      %p422 = scmp.eq.s32.totalorder %s43, 3
      %p423 = por %p421, %p422
      %p424 = scmp.ne.s32.totalorder %s415, %s416
      %p425 = scmp.eq.s32.totalorder %s43, 0
      %p426 = por %p424, %p425
      %p427 = scmp.ne.s32.totalorder %s415, %s416
      %p428 = scmp.eq.s32.totalorder %s44, 3
      %p429 = por %p427, %p428
      %p431 = scmp.ne.s32.totalorder %s416, %s430
      %p432 = scmp.eq.s32.totalorder %s44, 0
      %p433 = por %p431, %p432
      %s434 = ssub.s32 %s38, %s45
      %p435 = scmp.eq.s32.totalorder %s434, 0
      %s437 = sadd.s32 %s436, 1
      %s438 = scalar_select %p435, %s436, %s437
      %p441 = pneg %p435
      %p442 = scmp.eq.s32.totalorder %s38, 3
      %p443 = por %p441, %p442
      %p444 = scmp.ne.s32.totalorder %s436, %s439
      %p445 = scmp.eq.s32.totalorder %s38, 0
      %p446 = por %p444, %p445
      %p447 = scmp.ne.s32.totalorder %s436, %s439
      %p448 = scmp.eq.s32.totalorder %s43, 3
      %p449 = por %p447, %p448
      %p450 = scmp.ne.s32.totalorder %s439, %s440
      %p451 = scmp.eq.s32.totalorder %s43, 0
      %p452 = por %p450, %p451
      %p453 = scmp.ne.s32.totalorder %s439, %s440
      %p454 = scmp.eq.s32.totalorder %s44, 3
      %p455 = por %p453, %p454
      %p457 = scmp.ne.s32.totalorder %s440, %s456
      %p458 = scmp.eq.s32.totalorder %s44, 0
      %p459 = por %p457, %p458
      %p460 = scmp.le.s32.totalorder 1, %s38
      %p461 = scmp.lt.s32.totalorder %s38, 5
      %p462 = pnand %p460, %p461
      %p463 = pneg %p462
      // Predicated region
      $region9: #{multi_level_interaction.1} parent=5 // pred_check
        _
      $region10: #{multi_level_interaction.1} parent=5 // pred_check_branch
        %465 = sbr.rel (%p462) target = $region12
      $region11: #{multi_level_interaction.1} parent=5 // pred_region
        %s466 = ssub.s32 %s38, 1
        // Predicated region
        $region13: #{multi_level_interaction.1} parent=11 // pred_check
          %p467 = pneg %p59
        $region14: #{multi_level_interaction.1} parent=11 // pred_check_branch
          %469 = sbr.rel (%p467) target = $region16
        $region15: #{multi_level_interaction.1} parent=11 // pred_region
          _
        $region16: #{multi_level_interaction.1} parent=11 // pred_fallthru
          _
        // Predicated region
        $region17: #{multi_level_interaction.1} parent=11 // pred_check
          %p470 = pneg %p132
        $region18: #{multi_level_interaction.1} parent=11 // pred_check_branch
          %472 = sbr.rel (%p470) target = $region20
        $region19: #{multi_level_interaction.1} parent=11 // pred_region
          _
        $region20: #{multi_level_interaction.1} parent=11 // pred_fallthru
          _
        // Predicated region
        $region21: #{multi_level_interaction.1} parent=11 // pred_check
          %p473 = pneg %p153
        $region22: #{multi_level_interaction.1} parent=11 // pred_check_branch
          %475 = sbr.rel (%p473) target = $region24
        $region23: #{multi_level_interaction.1} parent=11 // pred_region
          _
        $region24: #{multi_level_interaction.1} parent=11 // pred_fallthru
          _
        // Predicated region
        $region25: #{multi_level_interaction.1} parent=11 // pred_check
          %p476 = pneg %p174
        $region26: #{multi_level_interaction.1} parent=11 // pred_check_branch
          %478 = sbr.rel (%p476) target = $region28
        $region27: #{multi_level_interaction.1} parent=11 // pred_region
          _
        $region28: #{multi_level_interaction.1} parent=11 // pred_fallthru
          _
        // Predicated region
        $region29: #{multi_level_interaction.1} parent=11 // pred_check
          %p479 = pneg %p195
        $region30: #{multi_level_interaction.1} parent=11 // pred_check_branch
          %481 = sbr.rel (%p479) target = $region32
        $region31: #{multi_level_interaction.1} parent=11 // pred_region
          _
        $region32: #{multi_level_interaction.1} parent=11 // pred_fallthru
          _
        // Predicated region
        $region33: #{multi_level_interaction.1} parent=11 // pred_check
          %p482 = pneg %p216
        $region34: #{multi_level_interaction.1} parent=11 // pred_check_branch
          %484 = sbr.rel (%p482) target = $region36
        $region35: #{multi_level_interaction.1} parent=11 // pred_region
          _
        $region36: #{multi_level_interaction.1} parent=11 // pred_fallthru
          _
        // Predicated region
        $region37: #{multi_level_interaction.1} parent=11 // pred_check
          %p485 = pneg %p237
        $region38: #{multi_level_interaction.1} parent=11 // pred_check_branch
          %487 = sbr.rel (%p485) target = $region40
        $region39: #{multi_level_interaction.1} parent=11 // pred_region
          _
        $region40: #{multi_level_interaction.1} parent=11 // pred_fallthru
          _
        // Predicated region
        $region41: #{multi_level_interaction.1} parent=11 // pred_check
          %p488 = pneg %p258
        $region42: #{multi_level_interaction.1} parent=11 // pred_check_branch
          %490 = sbr.rel (%p488) target = $region44
        $region43: #{multi_level_interaction.1} parent=11 // pred_region
          _
        $region44: #{multi_level_interaction.1} parent=11 // pred_fallthru
          _
        // Predicated region
        $region45: #{multi_level_interaction.1} parent=11 // pred_check
          %p491 = pneg %p279
        $region46: #{multi_level_interaction.1} parent=11 // pred_check_branch
          %493 = sbr.rel (%p491) target = $region48
        $region47: #{multi_level_interaction.1} parent=11 // pred_region
          _
        $region48: #{multi_level_interaction.1} parent=11 // pred_fallthru
          _
        // Predicated region
        $region49: #{multi_level_interaction.1} parent=11 // pred_check
          %p494 = pneg %p300
        $region50: #{multi_level_interaction.1} parent=11 // pred_check_branch
          %496 = sbr.rel (%p494) target = $region52
        $region51: #{multi_level_interaction.1} parent=11 // pred_region
          _
        $region52: #{multi_level_interaction.1} parent=11 // pred_fallthru
          _
        // Predicated region
        $region53: #{multi_level_interaction.1} parent=11 // pred_check
          %p497 = pneg %p321
        $region54: #{multi_level_interaction.1} parent=11 // pred_check_branch
          %499 = sbr.rel (%p497) target = $region56
        $region55: #{multi_level_interaction.1} parent=11 // pred_region
          _
        $region56: #{multi_level_interaction.1} parent=11 // pred_fallthru
          _
        // Predicated region
        $region57: #{multi_level_interaction.1} parent=11 // pred_check
          %p500 = pneg %p342
        $region58: #{multi_level_interaction.1} parent=11 // pred_check_branch
          %502 = sbr.rel (%p500) target = $region60
        $region59: #{multi_level_interaction.1} parent=11 // pred_region
          _
        $region60: #{multi_level_interaction.1} parent=11 // pred_fallthru
          _
        // Predicated region
        $region61: #{multi_level_interaction.1} parent=11 // pred_check
          %p503 = pneg %p363
        $region62: #{multi_level_interaction.1} parent=11 // pred_check_branch
          %505 = sbr.rel (%p503) target = $region64
        $region63: #{multi_level_interaction.1} parent=11 // pred_region
          _
        $region64: #{multi_level_interaction.1} parent=11 // pred_fallthru
          _
        // Predicated region
        $region65: #{multi_level_interaction.1} parent=11 // pred_check
          %p506 = pneg %p384
        $region66: #{multi_level_interaction.1} parent=11 // pred_check_branch
          %508 = sbr.rel (%p506) target = $region68
        $region67: #{multi_level_interaction.1} parent=11 // pred_region
          _
        $region68: #{multi_level_interaction.1} parent=11 // pred_fallthru
          _
        // Predicated region
        $region69: #{multi_level_interaction.1} parent=11 // pred_check
          %p509 = pneg %p405
        $region70: #{multi_level_interaction.1} parent=11 // pred_check_branch
          %511 = sbr.rel (%p509) target = $region72
        $region71: #{multi_level_interaction.1} parent=11 // pred_region
          _
        $region72: #{multi_level_interaction.1} parent=11 // pred_fallthru
          _
      $region12: #{multi_level_interaction.1} parent=5 // pred_fallthru
        _
      %p512 = scmp.lt.s32.totalorder %s38, 4
      // Predicated region
      $region73: #{multi_level_interaction.1} parent=5 // pred_check
        %p513 = pneg %p512
      $region74: #{multi_level_interaction.1} parent=5 // pred_check_branch
        %515 = sbr.rel (%p513) target = $region76
      $region75: #{multi_level_interaction.1} parent=5 // pred_region
        // Predicated region
        $region77: #{multi_level_interaction.1} parent=75 // pred_check
          %p516 = pneg %p79
        $region78: #{multi_level_interaction.1} parent=75 // pred_check_branch
          %518 = sbr.rel (%p516) target = $region80
        $region79: #{multi_level_interaction.1} parent=75 // pred_region
          %s519 = smul.u32 2, %s38
          %p520 = scmp.lt.s32.totalorder %s519, 7
          %s521 = scalar_select %p520, %s519, 7
          %s522 = smul.addr %s521, 8
          %s523 = scalar_lea.vmem %s3, %s522
          %s524 = smul.u32 2, %s38
        $region80: #{multi_level_interaction.1} parent=75 // pred_fallthru
          _
        // Predicated region
        $region81: #{multi_level_interaction.1} parent=75 // pred_check
          %p525 = pneg %p105
        $region82: #{multi_level_interaction.1} parent=75 // pred_check_branch
          %527 = sbr.rel (%p525) target = $region84
        $region83: #{multi_level_interaction.1} parent=75 // pred_region
          %s528 = smul.u32 2, %s38
          %p529 = scmp.lt.s32.totalorder %s528, 7
          %s530 = scalar_select %p529, %s528, 7
          %s531 = smul.addr %s530, 8
          %s532 = scalar_lea.vmem %s4, %s531
          %s533 = smul.u32 2, %s38
        $region84: #{multi_level_interaction.1} parent=75 // pred_fallthru
          _
      $region76: #{multi_level_interaction.1} parent=5 // pred_fallthru
        _
      %p534 = scmp.le.s32.totalorder 1, %s38
      %p535 = scmp.lt.s32.totalorder %s38, 5
      %p536 = pnand %p534, %p535
      %p537 = pneg %p536
      // Predicated region
      $region85: #{multi_level_interaction.1} parent=5 // pred_check
        _
      $region86: #{multi_level_interaction.1} parent=5 // pred_check_branch
        %539 = sbr.rel (%p536) target = $region88
      $region87: #{multi_level_interaction.1} parent=5 // pred_region
        %s540 = ssub.s32 %s38, 1
        %p541 = pneg %p59
        %p542 = pneg %p56
        %s543 = smul.u32 2, %s43
        %p544 = scmp.lt.s32.totalorder %s543, 7
        %s545 = scalar_select %p544, %s543, 7
        %s546 = smul.addr %s545, 8
        %s547 = scalar_lea.vmem %s3, %s546
        %p548 = pneg %p85
        %p549 = pneg %p82
        %s550 = smul.u32 2, %s43
        %p551 = scmp.lt.s32.totalorder %s550, 7
        %s552 = scalar_select %p551, %s550, 7
        %s553 = smul.addr %s552, 8
        %s554 = scalar_lea.vmem %s4, %s553
        %p555 = pneg %p111
        %p556 = pneg %p108
        %p557 = pneg %p132
        %p558 = pneg %p129
        %p559 = pneg %p153
        %p560 = pneg %p150
        %p561 = pneg %p174
        %p562 = pneg %p171
        %p563 = pneg %p195
        %p564 = pneg %p192
        %p565 = pneg %p216
        %p566 = pneg %p213
        %p567 = pneg %p237
        %p568 = pneg %p234
        %p569 = pneg %p258
        %p570 = pneg %p255
        %p571 = pneg %p279
        %p572 = pneg %p276
        %p573 = pneg %p300
        %p574 = pneg %p297
        %p575 = pneg %p321
        %p576 = pneg %p318
        %p577 = pneg %p342
        %p578 = pneg %p339
        %p579 = pneg %p363
        %p580 = pneg %p360
        %p581 = pneg %p384
        %p582 = pneg %p381
        %p583 = pneg %p405
        %p584 = pneg %p402
        %p585 = pneg %p426
        %p586 = pneg %p423
        %p587 = pneg %p452
        %p588 = pneg %p449
        %s589 = smul.u32 2, %s43
        %p590 = scmp.lt.s32.totalorder %s589, 7
        %s591 = scalar_select %p590, %s589, 7
        %s592 = smul.addr %s591, 8
        %s593 = scalar_lea.vmem %s20, %s592
        %s594 = smul.u32 2, %s43
        %p595 = scmp.lt.s32.totalorder %s594, 7
        %s596 = scalar_select %p595, %s594, 7
        %s597 = smul.addr %s596, 8
        %s598 = scalar_lea.vmem %s3, %s597
        %s599 = smul.u32 2, %s43
        %s600 = smul.u32 2, %s43
        %p601 = scmp.lt.s32.totalorder %s600, 7
        %s602 = scalar_select %p601, %s600, 7
        %s603 = smul.addr %s602, 8
        %s604 = scalar_lea.vmem %s4, %s603
        %s605 = smul.u32 2, %s43
        %s606 = smul.u32 2, %s43
        %p607 = scmp.lt.s32.totalorder %s606, 7
        %s608 = scalar_select %p607, %s606, 7
        %s609 = smul.addr %s608, 8
        %s610 = scalar_lea.vmem %s20, %s609
        %s611 = smul.u32 2, %s43
        %s612 = smul.u32 %s43, 16
        %p613 = scmp.eq.s32.totalorder %s43, 0
        // Predicated region
        $region89: #{multi_level_interaction.1} parent=87 // pred_check
          %p614 = pneg %p613
        $region90: #{multi_level_interaction.1} parent=87 // pred_check_branch
          %616 = sbr.rel (%p614) target = $region92
        $region91: #{multi_level_interaction.1} parent=87 // pred_region
          %v617 = vld [vmem:[%s2] sm:$0xff]
          %v618 = vld [vmem:[%s2 + $0x8] sm:$0xff]
          %v619 = vld [vmem:[%s5] sm:$0xff]
          %v620 = vld [vmem:[%s5 + $0x8] sm:$0xff]
          %v621 = vld [vmem:[%s5 + $0x10] sm:$0xff]
          %v622 = vld [vmem:[%s5 + $0x18] sm:$0xff]
          %v623 = vld [vmem:[%s5 + $0x20] sm:$0xff]
          %v624 = vld [vmem:[%s5 + $0x28] sm:$0xff]
          %v625 = vld [vmem:[%s5 + $0x30] sm:$0xff]
          %v626 = vld [vmem:[%s5 + $0x38] sm:$0xff]
          %v627 = vld [vmem:[%s5 + $0x40] sm:$0xff]
          %v628 = vld [vmem:[%s5 + $0x48] sm:$0xff]
          %v629 = vld [vmem:[%s5 + $0x50] sm:$0xff]
          %v630 = vld [vmem:[%s5 + $0x58] sm:$0xff]
          %v631 = vld [vmem:[%s5 + $0x60] sm:$0xff]
          %v632 = vld [vmem:[%s5 + $0x68] sm:$0xff]
          %v633 = vld [vmem:[%s5 + $0x70] sm:$0xff]
          %v634 = vld [vmem:[%s5 + $0x78] sm:$0xff]
          %v635 = vld [vmem:[%s6] sm:$0x1]
          %v637 = vlaneseq
          %v638 = vshrl.u32 %v637, 7
          %v639 = vsub.s32 0, %v638
          %v640 = vrot.slane %v635, %v639
          %642 = vmatprep.subr.mxu0 0.0
          %643 = vmatpush1.msra.mxu0 %v619
          %644 = vmatprep.subr.mxu0 0.0
          %645 = vmatpush1.msra.mxu0 %v620
          %646 = vmatprep.subr.mxu0 0.0
          %647 = vmatpush1.msra.mxu0 %v621
          %648 = vmatprep.subr.mxu0 0.0
          %649 = vmatpush1.msra.mxu0 %v622
          %650 = vmatprep.subr.mxu0 0.0
          %651 = vmatpush1.msra.mxu0 %v623
          %652 = vmatprep.subr.mxu0 0.0
          %653 = vmatpush1.msra.mxu0 %v624
          %654 = vmatprep.subr.mxu0 0.0
          %655 = vmatpush1.msra.mxu0 %v625
          %656 = vmatprep.subr.mxu0 0.0
          %657 = vmatpush1.msra.mxu0 %v626
          %658 = vmatprep.subr.mxu0 0.0
          %659 = vmatpush1.msra.mxu0 %v627
          %660 = vmatprep.subr.mxu0 0.0
          %661 = vmatpush1.msra.mxu0 %v628
          %662 = vmatprep.subr.mxu0 0.0
          %663 = vmatpush1.msra.mxu0 %v629
          %664 = vmatprep.subr.mxu0 0.0
          %665 = vmatpush1.msra.mxu0 %v630
          %666 = vmatprep.subr.mxu0 0.0
          %667 = vmatpush1.msra.mxu0 %v631
          %668 = vmatprep.subr.mxu0 0.0
          %669 = vmatpush1.msra.mxu0 %v632
          %670 = vmatprep.subr.mxu0 0.0
          %671 = vmatpush1.msra.mxu0 %v633
          %672 = vmatprep.subr.mxu0 0.0
          %673 = vmatpush1.msra.mxu0 %v634
          %674 = vmatprep.subr.mxu0 0.0
          %675 = vmatpush1.msra.mxu0 0.0
          %676 = vmatprep.subr.mxu0 0.0
          %677 = vmatpush1.msra.mxu0 0.0
          %678 = vmatprep.subr.mxu0 0.0
          %679 = vmatpush1.msra.mxu0 0.0
          %680 = vmatprep.subr.mxu0 0.0
          %681 = vmatpush1.msra.mxu0 0.0
          %682 = vmatprep.subr.mxu0 0.0
          %683 = vmatpush1.msra.mxu0 0.0
          %684 = vmatprep.subr.mxu0 0.0
          %685 = vmatpush1.msra.mxu0 0.0
          %686 = vmatprep.subr.mxu0 0.0
          %687 = vmatpush1.msra.mxu0 0.0
          %688 = vmatprep.subr.mxu0 0.0
          %689 = vmatpush1.msra.mxu0 0.0
          %690 = vmatprep.subr.mxu0 0.0
          %691 = vmatpush1.msra.mxu0 0.0
          %692 = vmatprep.subr.mxu0 0.0
          %693 = vmatpush1.msra.mxu0 0.0
          %694 = vmatprep.subr.mxu0 0.0
          %695 = vmatpush1.msra.mxu0 0.0
          %696 = vmatprep.subr.mxu0 0.0
          %697 = vmatpush1.msra.mxu0 0.0
          %698 = vmatprep.subr.mxu0 0.0
          %699 = vmatpush1.msra.mxu0 0.0
          %700 = vmatprep.subr.mxu0 0.0
          %701 = vmatpush1.msra.mxu0 0.0
          %702 = vmatprep.subr.mxu0 0.0
          %703 = vmatpush1.msra.mxu0 0.0
          %704 = vmatprep.subr.mxu0 0.0
          %705 = vmatpush1.msra.mxu0 0.0
          %706 = vmatprep.mubr.f32.mxu0 0.0
          %707 = vmatmul.mubr.f32.gmra.mrb[0].mxu0 %v617
          %v708 = vpop.f32.mrb[0].mxu0
          %v709 = vadd.f32 %v640, %v708
          %v710 = vpop.f32.mrb[0].mxu0
          %711 = vmatprep.mubr.f32.mxu0 0.0
          %712 = vmatmul.mubr.f32.gmra.mrb[0].mxu0 %v618
          %v713 = vpop.f32.mrb[0].mxu0
          %v714 = vadd.f32 %v640, %v713
          %v715 = vpop.f32.mrb[0].mxu0
          %716 = vdwg.mxu0
          %717 = vst [vmem:[#allocation2] sm:$0xff] %v709
          %718 = vst [vmem:[#allocation2 + $0x8] sm:$0xff] %v714
          %719 = vst [vmem:[#allocation3] sm:$0xff] 0.0
          %720 = vst [vmem:[#allocation3 + $0x8] sm:$0xff] 0.0
        $region92: #{multi_level_interaction.1} parent=87 // pred_fallthru
          _
        %v721 = vld [vmem:[%s598] sm:$0xff]
        %v722 = vld [vmem:[%s598 + $0x8] sm:$0xff]
        %v723 = vld [vmem:[%s7] sm:$0xff]
        %v724 = vld [vmem:[%s7 + $0x8] sm:$0xff]
        %v725 = vld [vmem:[%s7 + $0x10] sm:$0xff]
        %v726 = vld [vmem:[%s7 + $0x18] sm:$0xff]
        %v727 = vld [vmem:[%s7 + $0x20] sm:$0xff]
        %v728 = vld [vmem:[%s7 + $0x28] sm:$0xff]
        %v729 = vld [vmem:[%s7 + $0x30] sm:$0xff]
        %v730 = vld [vmem:[%s7 + $0x38] sm:$0xff]
        %v731 = vld [vmem:[%s7 + $0x40] sm:$0xff]
        %v732 = vld [vmem:[%s7 + $0x48] sm:$0xff]
        %v733 = vld [vmem:[%s7 + $0x50] sm:$0xff]
        %v734 = vld [vmem:[%s7 + $0x58] sm:$0xff]
        %v735 = vld [vmem:[%s7 + $0x60] sm:$0xff]
        %v736 = vld [vmem:[%s7 + $0x68] sm:$0xff]
        %v737 = vld [vmem:[%s7 + $0x70] sm:$0xff]
        %v738 = vld [vmem:[%s7 + $0x78] sm:$0xff]
        %v739 = vld [vmem:[%s8] sm:$0x1]
        %v741 = vlaneseq
        %v742 = vshrl.u32 %v741, 7
        %v743 = vsub.s32 0, %v742
        %v744 = vrot.slane %v739, %v743
        %746 = vmatprep.subr.mxu0 0.0
        %747 = vmatpush1.msra.mxu0 %v723
        %748 = vmatprep.subr.mxu0 0.0
        %749 = vmatpush1.msra.mxu0 %v724
        %750 = vmatprep.subr.mxu0 0.0
        %751 = vmatpush1.msra.mxu0 %v725
        %752 = vmatprep.subr.mxu0 0.0
        %753 = vmatpush1.msra.mxu0 %v726
        %754 = vmatprep.subr.mxu0 0.0
        %755 = vmatpush1.msra.mxu0 %v727
        %756 = vmatprep.subr.mxu0 0.0
        %757 = vmatpush1.msra.mxu0 %v728
        %758 = vmatprep.subr.mxu0 0.0
        %759 = vmatpush1.msra.mxu0 %v729
        %760 = vmatprep.subr.mxu0 0.0
        %761 = vmatpush1.msra.mxu0 %v730
        %762 = vmatprep.subr.mxu0 0.0
        %763 = vmatpush1.msra.mxu0 %v731
        %764 = vmatprep.subr.mxu0 0.0
        %765 = vmatpush1.msra.mxu0 %v732
        %766 = vmatprep.subr.mxu0 0.0
        %767 = vmatpush1.msra.mxu0 %v733
        %768 = vmatprep.subr.mxu0 0.0
        %769 = vmatpush1.msra.mxu0 %v734
        %770 = vmatprep.subr.mxu0 0.0
        %771 = vmatpush1.msra.mxu0 %v735
        %772 = vmatprep.subr.mxu0 0.0
        %773 = vmatpush1.msra.mxu0 %v736
        %774 = vmatprep.subr.mxu0 0.0
        %775 = vmatpush1.msra.mxu0 %v737
        %776 = vmatprep.subr.mxu0 0.0
        %777 = vmatpush1.msra.mxu0 %v738
        %778 = vmatprep.subr.mxu0 0.0
        %779 = vmatpush1.msra.mxu0 0.0
        %780 = vmatprep.subr.mxu0 0.0
        %781 = vmatpush1.msra.mxu0 0.0
        %782 = vmatprep.subr.mxu0 0.0
        %783 = vmatpush1.msra.mxu0 0.0
        %784 = vmatprep.subr.mxu0 0.0
        %785 = vmatpush1.msra.mxu0 0.0
        %786 = vmatprep.subr.mxu0 0.0
        %787 = vmatpush1.msra.mxu0 0.0
        %788 = vmatprep.subr.mxu0 0.0
        %789 = vmatpush1.msra.mxu0 0.0
        %790 = vmatprep.subr.mxu0 0.0
        %791 = vmatpush1.msra.mxu0 0.0
        %792 = vmatprep.subr.mxu0 0.0
        %793 = vmatpush1.msra.mxu0 0.0
        %794 = vmatprep.subr.mxu0 0.0
        %795 = vmatpush1.msra.mxu0 0.0
        %796 = vmatprep.subr.mxu0 0.0
        %797 = vmatpush1.msra.mxu0 0.0
        %798 = vmatprep.subr.mxu0 0.0
        %799 = vmatpush1.msra.mxu0 0.0
        %800 = vmatprep.subr.mxu0 0.0
        %801 = vmatpush1.msra.mxu0 0.0
        %802 = vmatprep.subr.mxu0 0.0
        %803 = vmatpush1.msra.mxu0 0.0
        %804 = vmatprep.subr.mxu0 0.0
        %805 = vmatpush1.msra.mxu0 0.0
        %806 = vmatprep.subr.mxu0 0.0
        %807 = vmatpush1.msra.mxu0 0.0
        %808 = vmatprep.subr.mxu0 0.0
        %809 = vmatpush1.msra.mxu0 0.0
        %810 = vmatprep.mubr.f32.mxu0 0.0
        %811 = vmatmul.mubr.f32.gmra.mrb[0].mxu0 %v721
        %v812 = vpop.f32.mrb[0].mxu0
        %v813 = vadd.f32 %v744, %v812
        %v814 = vpop.f32.mrb[0].mxu0
        %815 = vmatprep.mubr.f32.mxu0 0.0
        %816 = vmatmul.mubr.f32.gmra.mrb[0].mxu0 %v722
        %v817 = vpop.f32.mrb[0].mxu0
        %v818 = vadd.f32 %v744, %v817
        %v819 = vpop.f32.mrb[0].mxu0
        %820 = vdwg.mxu0
        %v821 = vmul.f32 %v813, 0.5
        %v822 = vmul.f32 %v818, 0.5
        %vm823 = vcmp.gt.f32.partialorder %v821, 14.0
        %vm824 = vcmp.gt.f32.partialorder %v822, 14.0
        %v825 = vmin.f32 %v821, 14.0
        %v826 = vmin.f32 %v822, 14.0
        %v827 = vmul.f32 %v825, 1.442695
        %v828 = vpow.pop %v827
        %v829 = vmul.f32 %v826, 1.442695
        %v830 = vpow.pop %v829
        %v831 = vadd.f32 %v828, 1.0
        %v832 = vadd.f32 %v830, 1.0
        %v833 = vlog2.pop %v831
        %v834 = vmul.f32 %v833, 0.6931472
        %v835 = vlog2.pop %v832
        %v836 = vmul.f32 %v835, 0.6931472
        %v837 = vmul.f32 %v834, 2.0
        %v838 = vmul.f32 %v836, 2.0
        %v839 = vsel %vm823, %v813, %v837
        %v840 = vsel %vm824, %v818, %v838
        %v841 = vld [vmem:[%s9] sm:$0xff]
        %v842 = vld [vmem:[%s9 + $0x8] sm:$0xff]
        %v843 = vld [vmem:[%s9 + $0x10] sm:$0xff]
        %v844 = vld [vmem:[%s9 + $0x18] sm:$0xff]
        %v845 = vld [vmem:[%s9 + $0x20] sm:$0xff]
        %v846 = vld [vmem:[%s9 + $0x28] sm:$0xff]
        %v847 = vld [vmem:[%s9 + $0x30] sm:$0xff]
        %v848 = vld [vmem:[%s9 + $0x38] sm:$0xff]
        %v849 = vld [vmem:[%s9 + $0x40] sm:$0xff]
        %v850 = vld [vmem:[%s9 + $0x48] sm:$0xff]
        %v851 = vld [vmem:[%s9 + $0x50] sm:$0xff]
        %v852 = vld [vmem:[%s9 + $0x58] sm:$0xff]
        %v853 = vld [vmem:[%s9 + $0x60] sm:$0xff]
        %v854 = vld [vmem:[%s9 + $0x68] sm:$0xff]
        %v855 = vld [vmem:[%s9 + $0x70] sm:$0xff]
        %v856 = vld [vmem:[%s9 + $0x78] sm:$0xff]
        %v857 = vld [vmem:[%s10] sm:$0x1]
        %v859 = vlaneseq
        %v860 = vshrl.u32 %v859, 7
        %v861 = vsub.s32 0, %v860
        %v862 = vrot.slane %v857, %v861
        %864 = vmatprep.subr.mxu0 0.0
        %865 = vmatpush1.msra.mxu0 %v841
        %866 = vmatprep.subr.mxu0 0.0
        %867 = vmatpush1.msra.mxu0 %v842
        %868 = vmatprep.subr.mxu0 0.0
        %869 = vmatpush1.msra.mxu0 %v843
        %870 = vmatprep.subr.mxu0 0.0
        %871 = vmatpush1.msra.mxu0 %v844
        %872 = vmatprep.subr.mxu0 0.0
        %873 = vmatpush1.msra.mxu0 %v845
        %874 = vmatprep.subr.mxu0 0.0
        %875 = vmatpush1.msra.mxu0 %v846
        %876 = vmatprep.subr.mxu0 0.0
        %877 = vmatpush1.msra.mxu0 %v847
        %878 = vmatprep.subr.mxu0 0.0
        %879 = vmatpush1.msra.mxu0 %v848
        %880 = vmatprep.subr.mxu0 0.0
        %881 = vmatpush1.msra.mxu0 %v849
        %882 = vmatprep.subr.mxu0 0.0
        %883 = vmatpush1.msra.mxu0 %v850
        %884 = vmatprep.subr.mxu0 0.0
        %885 = vmatpush1.msra.mxu0 %v851
        %886 = vmatprep.subr.mxu0 0.0
        %887 = vmatpush1.msra.mxu0 %v852
        %888 = vmatprep.subr.mxu0 0.0
        %889 = vmatpush1.msra.mxu0 %v853
        %890 = vmatprep.subr.mxu0 0.0
        %891 = vmatpush1.msra.mxu0 %v854
        %892 = vmatprep.subr.mxu0 0.0
        %893 = vmatpush1.msra.mxu0 %v855
        %894 = vmatprep.subr.mxu0 0.0
        %895 = vmatpush1.msra.mxu0 %v856
        %896 = vmatprep.subr.mxu0 0.0
        %897 = vmatpush1.msra.mxu0 0.0
        %898 = vmatprep.subr.mxu0 0.0
        %899 = vmatpush1.msra.mxu0 0.0
        %900 = vmatprep.subr.mxu0 0.0
        %901 = vmatpush1.msra.mxu0 0.0
        %902 = vmatprep.subr.mxu0 0.0
        %903 = vmatpush1.msra.mxu0 0.0
        %904 = vmatprep.subr.mxu0 0.0
        %905 = vmatpush1.msra.mxu0 0.0
        %906 = vmatprep.subr.mxu0 0.0
        %907 = vmatpush1.msra.mxu0 0.0
        %908 = vmatprep.subr.mxu0 0.0
        %909 = vmatpush1.msra.mxu0 0.0
        %910 = vmatprep.subr.mxu0 0.0
        %911 = vmatpush1.msra.mxu0 0.0
        %912 = vmatprep.subr.mxu0 0.0
        %913 = vmatpush1.msra.mxu0 0.0
        %914 = vmatprep.subr.mxu0 0.0
        %915 = vmatpush1.msra.mxu0 0.0
        %916 = vmatprep.subr.mxu0 0.0
        %917 = vmatpush1.msra.mxu0 0.0
        %918 = vmatprep.subr.mxu0 0.0
        %919 = vmatpush1.msra.mxu0 0.0
        %920 = vmatprep.subr.mxu0 0.0
        %921 = vmatpush1.msra.mxu0 0.0
        %922 = vmatprep.subr.mxu0 0.0
        %923 = vmatpush1.msra.mxu0 0.0
        %924 = vmatprep.subr.mxu0 0.0
        %925 = vmatpush1.msra.mxu0 0.0
        %926 = vmatprep.subr.mxu0 0.0
        %927 = vmatpush1.msra.mxu0 0.0
        %928 = vmatprep.mubr.f32.mxu0 0.0
        %929 = vmatmul.mubr.f32.gmra.mrb[0].mxu0 %v839
        %v930 = vpop.f32.mrb[0].mxu0
        %v931 = vadd.f32 %v862, %v930
        %v932 = vpop.f32.mrb[0].mxu0
        %933 = vmatprep.mubr.f32.mxu0 0.0
        %934 = vmatmul.mubr.f32.gmra.mrb[0].mxu0 %v840
        %v935 = vpop.f32.mrb[0].mxu0
        %v936 = vadd.f32 %v862, %v935
        %v937 = vpop.f32.mrb[0].mxu0
        %938 = vdwg.mxu0
        %v939 = vld [vmem:[%s604] sm:$0xff]
        %v940 = vld [vmem:[%s604 + $0x8] sm:$0xff]
        %v941 = vld [vmem:[%s11] sm:$0xff]
        %v942 = vld [vmem:[%s11 + $0x8] sm:$0xff]
        %v943 = vld [vmem:[%s11 + $0x10] sm:$0xff]
        %v944 = vld [vmem:[%s11 + $0x18] sm:$0xff]
        %v945 = vld [vmem:[%s11 + $0x20] sm:$0xff]
        %v946 = vld [vmem:[%s11 + $0x28] sm:$0xff]
        %v947 = vld [vmem:[%s11 + $0x30] sm:$0xff]
        %v948 = vld [vmem:[%s11 + $0x38] sm:$0xff]
        %v949 = vld [vmem:[%s11 + $0x40] sm:$0xff]
        %v950 = vld [vmem:[%s11 + $0x48] sm:$0xff]
        %v951 = vld [vmem:[%s11 + $0x50] sm:$0xff]
        %v952 = vld [vmem:[%s11 + $0x58] sm:$0xff]
        %v953 = vld [vmem:[%s11 + $0x60] sm:$0xff]
        %v954 = vld [vmem:[%s11 + $0x68] sm:$0xff]
        %v955 = vld [vmem:[%s11 + $0x70] sm:$0xff]
        %v956 = vld [vmem:[%s11 + $0x78] sm:$0xff]
        %v957 = vld [vmem:[%s12] sm:$0x1]
        %v959 = vlaneseq
        %v960 = vshrl.u32 %v959, 7
        %v961 = vsub.s32 0, %v960
        %v962 = vrot.slane %v957, %v961
        %964 = vmatprep.subr.mxu0 0.0
        %965 = vmatpush1.msra.mxu0 %v941
        %966 = vmatprep.subr.mxu0 0.0
        %967 = vmatpush1.msra.mxu0 %v942
        %968 = vmatprep.subr.mxu0 0.0
        %969 = vmatpush1.msra.mxu0 %v943
        %970 = vmatprep.subr.mxu0 0.0
        %971 = vmatpush1.msra.mxu0 %v944
        %972 = vmatprep.subr.mxu0 0.0
        %973 = vmatpush1.msra.mxu0 %v945
        %974 = vmatprep.subr.mxu0 0.0
        %975 = vmatpush1.msra.mxu0 %v946
        %976 = vmatprep.subr.mxu0 0.0
        %977 = vmatpush1.msra.mxu0 %v947
        %978 = vmatprep.subr.mxu0 0.0
        %979 = vmatpush1.msra.mxu0 %v948
        %980 = vmatprep.subr.mxu0 0.0
        %981 = vmatpush1.msra.mxu0 %v949
        %982 = vmatprep.subr.mxu0 0.0
        %983 = vmatpush1.msra.mxu0 %v950
        %984 = vmatprep.subr.mxu0 0.0
        %985 = vmatpush1.msra.mxu0 %v951
        %986 = vmatprep.subr.mxu0 0.0
        %987 = vmatpush1.msra.mxu0 %v952
        %988 = vmatprep.subr.mxu0 0.0
        %989 = vmatpush1.msra.mxu0 %v953
        %990 = vmatprep.subr.mxu0 0.0
        %991 = vmatpush1.msra.mxu0 %v954
        %992 = vmatprep.subr.mxu0 0.0
        %993 = vmatpush1.msra.mxu0 %v955
        %994 = vmatprep.subr.mxu0 0.0
        %995 = vmatpush1.msra.mxu0 %v956
        %996 = vmatprep.subr.mxu0 0.0
        %997 = vmatpush1.msra.mxu0 0.0
        %998 = vmatprep.subr.mxu0 0.0
        %999 = vmatpush1.msra.mxu0 0.0
        %1000 = vmatprep.subr.mxu0 0.0
        %1001 = vmatpush1.msra.mxu0 0.0
        %1002 = vmatprep.subr.mxu0 0.0
        %1003 = vmatpush1.msra.mxu0 0.0
        %1004 = vmatprep.subr.mxu0 0.0
        %1005 = vmatpush1.msra.mxu0 0.0
        %1006 = vmatprep.subr.mxu0 0.0
        %1007 = vmatpush1.msra.mxu0 0.0
        %1008 = vmatprep.subr.mxu0 0.0
        %1009 = vmatpush1.msra.mxu0 0.0
        %1010 = vmatprep.subr.mxu0 0.0
        %1011 = vmatpush1.msra.mxu0 0.0
        %1012 = vmatprep.subr.mxu0 0.0
        %1013 = vmatpush1.msra.mxu0 0.0
        %1014 = vmatprep.subr.mxu0 0.0
        %1015 = vmatpush1.msra.mxu0 0.0
        %1016 = vmatprep.subr.mxu0 0.0
        %1017 = vmatpush1.msra.mxu0 0.0
        %1018 = vmatprep.subr.mxu0 0.0
        %1019 = vmatpush1.msra.mxu0 0.0
        %1020 = vmatprep.subr.mxu0 0.0
        %1021 = vmatpush1.msra.mxu0 0.0
        %1022 = vmatprep.subr.mxu0 0.0
        %1023 = vmatpush1.msra.mxu0 0.0
        %1024 = vmatprep.subr.mxu0 0.0
        %1025 = vmatpush1.msra.mxu0 0.0
        %1026 = vmatprep.subr.mxu0 0.0
        %1027 = vmatpush1.msra.mxu0 0.0
        %1028 = vmatprep.mubr.f32.mxu0 0.0
        %1029 = vmatmul.mubr.f32.gmra.mrb[0].mxu0 %v939
        %v1030 = vpop.f32.mrb[0].mxu0
        %v1031 = vadd.f32 %v962, %v1030
        %v1032 = vpop.f32.mrb[0].mxu0
        %1033 = vmatprep.mubr.f32.mxu0 0.0
        %1034 = vmatmul.mubr.f32.gmra.mrb[0].mxu0 %v940
        %v1035 = vpop.f32.mrb[0].mxu0
        %v1036 = vadd.f32 %v962, %v1035
        %v1037 = vpop.f32.mrb[0].mxu0
        %1038 = vdwg.mxu0
        %v1039 = vld [vmem:[%s13] sm:$0xff]
        %v1040 = vld [vmem:[%s13 + $0x8] sm:$0xff]
        %v1041 = vld [vmem:[%s13 + $0x10] sm:$0xff]
        %v1042 = vld [vmem:[%s13 + $0x18] sm:$0xff]
        %v1043 = vld [vmem:[%s13 + $0x20] sm:$0xff]
        %v1044 = vld [vmem:[%s13 + $0x28] sm:$0xff]
        %v1045 = vld [vmem:[%s13 + $0x30] sm:$0xff]
        %v1046 = vld [vmem:[%s13 + $0x38] sm:$0xff]
        %v1047 = vld [vmem:[%s13 + $0x40] sm:$0xff]
        %v1048 = vld [vmem:[%s13 + $0x48] sm:$0xff]
        %v1049 = vld [vmem:[%s13 + $0x50] sm:$0xff]
        %v1050 = vld [vmem:[%s13 + $0x58] sm:$0xff]
        %v1051 = vld [vmem:[%s13 + $0x60] sm:$0xff]
        %v1052 = vld [vmem:[%s13 + $0x68] sm:$0xff]
        %v1053 = vld [vmem:[%s13 + $0x70] sm:$0xff]
        %v1054 = vld [vmem:[%s13 + $0x78] sm:$0xff]
        %v1055 = vld [vmem:[%s14] sm:$0x1]
        %v1057 = vlaneseq
        %v1058 = vshrl.u32 %v1057, 7
        %v1059 = vsub.s32 0, %v1058
        %v1060 = vrot.slane %v1055, %v1059
        %1062 = vmatprep.subr.mxu0 0.0
        %1063 = vmatpush1.msra.mxu0 %v1039
        %1064 = vmatprep.subr.mxu0 0.0
        %1065 = vmatpush1.msra.mxu0 %v1040
        %1066 = vmatprep.subr.mxu0 0.0
        %1067 = vmatpush1.msra.mxu0 %v1041
        %1068 = vmatprep.subr.mxu0 0.0
        %1069 = vmatpush1.msra.mxu0 %v1042
        %1070 = vmatprep.subr.mxu0 0.0
        %1071 = vmatpush1.msra.mxu0 %v1043
        %1072 = vmatprep.subr.mxu0 0.0
        %1073 = vmatpush1.msra.mxu0 %v1044
        %1074 = vmatprep.subr.mxu0 0.0
        %1075 = vmatpush1.msra.mxu0 %v1045
        %1076 = vmatprep.subr.mxu0 0.0
        %1077 = vmatpush1.msra.mxu0 %v1046
        %1078 = vmatprep.subr.mxu0 0.0
        %1079 = vmatpush1.msra.mxu0 %v1047
        %1080 = vmatprep.subr.mxu0 0.0
        %1081 = vmatpush1.msra.mxu0 %v1048
        %1082 = vmatprep.subr.mxu0 0.0
        %1083 = vmatpush1.msra.mxu0 %v1049
        %1084 = vmatprep.subr.mxu0 0.0
        %1085 = vmatpush1.msra.mxu0 %v1050
        %1086 = vmatprep.subr.mxu0 0.0
        %1087 = vmatpush1.msra.mxu0 %v1051
        %1088 = vmatprep.subr.mxu0 0.0
        %1089 = vmatpush1.msra.mxu0 %v1052
        %1090 = vmatprep.subr.mxu0 0.0
        %1091 = vmatpush1.msra.mxu0 %v1053
        %1092 = vmatprep.subr.mxu0 0.0
        %1093 = vmatpush1.msra.mxu0 %v1054
        %1094 = vmatprep.subr.mxu0 0.0
        %1095 = vmatpush1.msra.mxu0 0.0
        %1096 = vmatprep.subr.mxu0 0.0
        %1097 = vmatpush1.msra.mxu0 0.0
        %1098 = vmatprep.subr.mxu0 0.0
        %1099 = vmatpush1.msra.mxu0 0.0
        %1100 = vmatprep.subr.mxu0 0.0
        %1101 = vmatpush1.msra.mxu0 0.0
        %1102 = vmatprep.subr.mxu0 0.0
        %1103 = vmatpush1.msra.mxu0 0.0
        %1104 = vmatprep.subr.mxu0 0.0
        %1105 = vmatpush1.msra.mxu0 0.0
        %1106 = vmatprep.subr.mxu0 0.0
        %1107 = vmatpush1.msra.mxu0 0.0
        %1108 = vmatprep.subr.mxu0 0.0
        %1109 = vmatpush1.msra.mxu0 0.0
        %1110 = vmatprep.subr.mxu0 0.0
        %1111 = vmatpush1.msra.mxu0 0.0
        %1112 = vmatprep.subr.mxu0 0.0
        %1113 = vmatpush1.msra.mxu0 0.0
        %1114 = vmatprep.subr.mxu0 0.0
        %1115 = vmatpush1.msra.mxu0 0.0
        %1116 = vmatprep.subr.mxu0 0.0
        %1117 = vmatpush1.msra.mxu0 0.0
        %1118 = vmatprep.subr.mxu0 0.0
        %1119 = vmatpush1.msra.mxu0 0.0
        %1120 = vmatprep.subr.mxu0 0.0
        %1121 = vmatpush1.msra.mxu0 0.0
        %1122 = vmatprep.subr.mxu0 0.0
        %1123 = vmatpush1.msra.mxu0 0.0
        %1124 = vmatprep.subr.mxu0 0.0
        %1125 = vmatpush1.msra.mxu0 0.0
        %1126 = vmatprep.mubr.f32.mxu0 0.0
        %1127 = vmatmul.mubr.f32.gmra.mrb[0].mxu0 %v1031
        %v1128 = vpop.f32.mrb[0].mxu0
        %v1129 = vadd.f32 %v1060, %v1128
        %v1130 = vpop.f32.mrb[0].mxu0
        %1131 = vmatprep.mubr.f32.mxu0 0.0
        %1132 = vmatmul.mubr.f32.gmra.mrb[0].mxu0 %v1036
        %v1133 = vpop.f32.mrb[0].mxu0
        %v1134 = vadd.f32 %v1060, %v1133
        %v1135 = vpop.f32.mrb[0].mxu0
        %1136 = vdwg.mxu0
        %v1137 = vmul.f32 %v1129, 0.5
        %v1138 = vmul.f32 %v1134, 0.5
        %vm1139 = vcmp.gt.f32.partialorder %v1137, 14.0
        %vm1140 = vcmp.gt.f32.partialorder %v1138, 14.0
        %v1141 = vmin.f32 %v1137, 14.0
        %v1142 = vmin.f32 %v1138, 14.0
        %v1143 = vmul.f32 %v1141, 1.442695
        %v1144 = vpow.pop %v1143
        %v1145 = vmul.f32 %v1142, 1.442695
        %v1146 = vpow.pop %v1145
        %v1147 = vadd.f32 %v1144, 1.0
        %v1148 = vadd.f32 %v1146, 1.0
        %v1149 = vlog2.pop %v1147
        %v1150 = vmul.f32 %v1149, 0.6931472
        %v1151 = vlog2.pop %v1148
        %v1152 = vmul.f32 %v1151, 0.6931472
        %v1153 = vmul.f32 %v1150, 2.0
        %v1154 = vmul.f32 %v1152, 2.0
        %v1155 = vsel %vm1139, %v1129, %v1153
        %v1156 = vsel %vm1140, %v1134, %v1154
        %1157 = vst [vmem:[%s610] sm:$0xff] %v1155
        %1158 = vst [vmem:[%s610 + $0x8] sm:$0xff] %v1156
        %s1159 = sld [smem:[#allocation6 + %s612]]
        %s1160 = scalar_lea.vmem [#allocation2], %s1159
        %v1161 = vld [vmem:[%s1160] sm:$0x1]
        %1162 = vst [vmem:[#allocation4] sm:$0x1] %v1161
        %s1163 = sadd.s32 %s612, 1
        %s1164 = sld [smem:[#allocation6 + %s1163]]
        %s1165 = scalar_lea.vmem [#allocation2], %s1164
        %v1166 = vld [vmem:[%s1165] sm:$0x1]
        %1167 = vst [vmem:[#allocation4 + $0x1] sm:$0x1] %v1166
        %s1168 = sadd.s32 %s612, 2
        %s1169 = sld [smem:[#allocation6 + %s1168]]
        %s1170 = scalar_lea.vmem [#allocation2], %s1169
        %v1171 = vld [vmem:[%s1170] sm:$0x1]
        %1172 = vst [vmem:[#allocation4 + $0x2] sm:$0x1] %v1171
        %s1173 = sadd.s32 %s612, 3
        %s1174 = sld [smem:[#allocation6 + %s1173]]
        %s1175 = scalar_lea.vmem [#allocation2], %s1174
        %v1176 = vld [vmem:[%s1175] sm:$0x1]
        %1177 = vst [vmem:[#allocation4 + $0x3] sm:$0x1] %v1176
        %s1178 = sadd.s32 %s612, 4
        %s1179 = sld [smem:[#allocation6 + %s1178]]
        %s1180 = scalar_lea.vmem [#allocation2], %s1179
        %v1181 = vld [vmem:[%s1180] sm:$0x1]
        %1182 = vst [vmem:[#allocation4 + $0x4] sm:$0x1] %v1181
        %s1183 = sadd.s32 %s612, 5
        %s1184 = sld [smem:[#allocation6 + %s1183]]
        %s1185 = scalar_lea.vmem [#allocation2], %s1184
        %v1186 = vld [vmem:[%s1185] sm:$0x1]
        %1187 = vst [vmem:[#allocation4 + $0x5] sm:$0x1] %v1186
        %s1188 = sadd.s32 %s612, 6
        %s1189 = sld [smem:[#allocation6 + %s1188]]
        %s1190 = scalar_lea.vmem [#allocation2], %s1189
        %v1191 = vld [vmem:[%s1190] sm:$0x1]
        %1192 = vst [vmem:[#allocation4 + $0x6] sm:$0x1] %v1191
        %s1193 = sadd.s32 %s612, 7
        %s1194 = sld [smem:[#allocation6 + %s1193]]
        %s1195 = scalar_lea.vmem [#allocation2], %s1194
        %v1196 = vld [vmem:[%s1195] sm:$0x1]
        %1197 = vst [vmem:[#allocation4 + $0x7] sm:$0x1] %v1196
        %s1198 = sadd.s32 %s612, 8
        %s1199 = sld [smem:[#allocation6 + %s1198]]
        %s1200 = scalar_lea.vmem [#allocation2], %s1199
        %v1201 = vld [vmem:[%s1200] sm:$0x1]
        %1202 = vst [vmem:[#allocation4 + $0x8] sm:$0x1] %v1201
        %s1203 = sadd.s32 %s612, 9
        %s1204 = sld [smem:[#allocation6 + %s1203]]
        %s1205 = scalar_lea.vmem [#allocation2], %s1204
        %v1206 = vld [vmem:[%s1205] sm:$0x1]
        %1207 = vst [vmem:[#allocation4 + $0x9] sm:$0x1] %v1206
        %s1208 = sadd.s32 %s612, 10
        %s1209 = sld [smem:[#allocation6 + %s1208]]
        %s1210 = scalar_lea.vmem [#allocation2], %s1209
        %v1211 = vld [vmem:[%s1210] sm:$0x1]
        %1212 = vst [vmem:[#allocation4 + $0xa] sm:$0x1] %v1211
        %s1213 = sadd.s32 %s612, 11
        %s1214 = sld [smem:[#allocation6 + %s1213]]
        %s1215 = scalar_lea.vmem [#allocation2], %s1214
        %v1216 = vld [vmem:[%s1215] sm:$0x1]
        %1217 = vst [vmem:[#allocation4 + $0xb] sm:$0x1] %v1216
        %s1218 = sadd.s32 %s612, 12
        %s1219 = sld [smem:[#allocation6 + %s1218]]
        %s1220 = scalar_lea.vmem [#allocation2], %s1219
        %v1221 = vld [vmem:[%s1220] sm:$0x1]
        %1222 = vst [vmem:[#allocation4 + $0xc] sm:$0x1] %v1221
        %s1223 = sadd.s32 %s612, 13
        %s1224 = sld [smem:[#allocation6 + %s1223]]
        %s1225 = scalar_lea.vmem [#allocation2], %s1224
        %v1226 = vld [vmem:[%s1225] sm:$0x1]
        %1227 = vst [vmem:[#allocation4 + $0xd] sm:$0x1] %v1226
        %s1228 = sadd.s32 %s612, 14
        %s1229 = sld [smem:[#allocation6 + %s1228]]
        %s1230 = scalar_lea.vmem [#allocation2], %s1229
        %v1231 = vld [vmem:[%s1230] sm:$0x1]
        %1232 = vst [vmem:[#allocation4 + $0xe] sm:$0x1] %v1231
        %s1233 = sadd.s32 %s612, 15
        %s1234 = sld [smem:[#allocation6 + %s1233]]
        %s1235 = scalar_lea.vmem [#allocation2], %s1234
        %v1236 = vld [vmem:[%s1235] sm:$0x1]
        %1237 = vst [vmem:[#allocation4 + $0xf] sm:$0x1] %v1236
        %v1238 = vld [vmem:[#allocation4] sm:$0xff]
        %v1239 = vld [vmem:[#allocation4 + $0x8] sm:$0xff]
        %v1240 = vmul.f32 %v1238, %v931
        %v1241 = vmul.f32 %v1239, %v936
        %v1242 = vadd.f32 %v1240, %v1031
        %v1243 = vadd.f32 %v1241, %v1036
        %1244 = vst [vmem:[#allocation4] sm:$0xff] %v1242
        %1245 = vst [vmem:[#allocation4 + $0x8] sm:$0xff] %v1243
        %s1246 = sld [smem:[#allocation7 + %s612]]
        %p1247 = scmp.lt.s32.totalorder %s612, 50
        %s1248 = scalar_select %p1247, 1.0, 0.0
        %s1249 = scalar_lea.vmem [#allocation3], %s1246
        %v1250 = vld [vmem:[%s1249] sm:$0x1]
        %v1251 = vld [vmem:[#allocation4] sm:$0x1]
        %v1252 = vstv %s1248
        %v1253 = vmul.f32 %v1252, %v1251
        %v1254 = vadd.f32 %v1250, %v1253
        %1255 = vst [vmem:[%s1249] sm:$0x1] %v1254
        %s1256 = sld [smem:[#allocation7 + %s1163]]
        %p1257 = scmp.lt.s32.totalorder %s1163, 50
        %s1258 = scalar_select %p1257, 1.0, 0.0
        %s1259 = scalar_lea.vmem [#allocation3], %s1256
        %v1260 = vld [vmem:[%s1259] sm:$0x1]
        %v1261 = vld [vmem:[#allocation4 + $0x1] sm:$0x1]
        %v1262 = vstv %s1258
        %v1263 = vmul.f32 %v1262, %v1261
        %v1264 = vadd.f32 %v1260, %v1263
        %1265 = vst [vmem:[%s1259] sm:$0x1] %v1264
        %s1266 = sld [smem:[#allocation7 + %s1168]]
        %p1267 = scmp.lt.s32.totalorder %s1168, 50
        %s1268 = scalar_select %p1267, 1.0, 0.0
        %s1269 = scalar_lea.vmem [#allocation3], %s1266
        %v1270 = vld [vmem:[%s1269] sm:$0x1]
        %v1271 = vld [vmem:[#allocation4 + $0x2] sm:$0x1]
        %v1272 = vstv %s1268
        %v1273 = vmul.f32 %v1272, %v1271
        %v1274 = vadd.f32 %v1270, %v1273
        %1275 = vst [vmem:[%s1269] sm:$0x1] %v1274
        %s1276 = sld [smem:[#allocation7 + %s1173]]
        %p1277 = scmp.lt.s32.totalorder %s1173, 50
        %s1278 = scalar_select %p1277, 1.0, 0.0
        %s1279 = scalar_lea.vmem [#allocation3], %s1276
        %v1280 = vld [vmem:[%s1279] sm:$0x1]
        %v1281 = vld [vmem:[#allocation4 + $0x3] sm:$0x1]
        %v1282 = vstv %s1278
        %v1283 = vmul.f32 %v1282, %v1281
        %v1284 = vadd.f32 %v1280, %v1283
        %1285 = vst [vmem:[%s1279] sm:$0x1] %v1284
        %s1286 = sld [smem:[#allocation7 + %s1178]]
        %p1287 = scmp.lt.s32.totalorder %s1178, 50
        %s1288 = scalar_select %p1287, 1.0, 0.0
        %s1289 = scalar_lea.vmem [#allocation3], %s1286
        %v1290 = vld [vmem:[%s1289] sm:$0x1]
        %v1291 = vld [vmem:[#allocation4 + $0x4] sm:$0x1]
        %v1292 = vstv %s1288
        %v1293 = vmul.f32 %v1292, %v1291
        %v1294 = vadd.f32 %v1290, %v1293
        %1295 = vst [vmem:[%s1289] sm:$0x1] %v1294
        %s1296 = sld [smem:[#allocation7 + %s1183]]
        %p1297 = scmp.lt.s32.totalorder %s1183, 50
        %s1298 = scalar_select %p1297, 1.0, 0.0
        %s1299 = scalar_lea.vmem [#allocation3], %s1296
        %v1300 = vld [vmem:[%s1299] sm:$0x1]
        %v1301 = vld [vmem:[#allocation4 + $0x5] sm:$0x1]
        %v1302 = vstv %s1298
        %v1303 = vmul.f32 %v1302, %v1301
        %v1304 = vadd.f32 %v1300, %v1303
        %1305 = vst [vmem:[%s1299] sm:$0x1] %v1304
        %s1306 = sld [smem:[#allocation7 + %s1188]]
        %p1307 = scmp.lt.s32.totalorder %s1188, 50
        %s1308 = scalar_select %p1307, 1.0, 0.0
        %s1309 = scalar_lea.vmem [#allocation3], %s1306
        %v1310 = vld [vmem:[%s1309] sm:$0x1]
        %v1311 = vld [vmem:[#allocation4 + $0x6] sm:$0x1]
        %v1312 = vstv %s1308
        %v1313 = vmul.f32 %v1312, %v1311
        %v1314 = vadd.f32 %v1310, %v1313
        %1315 = vst [vmem:[%s1309] sm:$0x1] %v1314
        %s1316 = sld [smem:[#allocation7 + %s1193]]
        %p1317 = scmp.lt.s32.totalorder %s1193, 50
        %s1318 = scalar_select %p1317, 1.0, 0.0
        %s1319 = scalar_lea.vmem [#allocation3], %s1316
        %v1320 = vld [vmem:[%s1319] sm:$0x1]
        %v1321 = vld [vmem:[#allocation4 + $0x7] sm:$0x1]
        %v1322 = vstv %s1318
        %v1323 = vmul.f32 %v1322, %v1321
        %v1324 = vadd.f32 %v1320, %v1323
        %1325 = vst [vmem:[%s1319] sm:$0x1] %v1324
        %s1326 = sld [smem:[#allocation7 + %s1198]]
        %p1327 = scmp.lt.s32.totalorder %s1198, 50
        %s1328 = scalar_select %p1327, 1.0, 0.0
        %s1329 = scalar_lea.vmem [#allocation3], %s1326
        %v1330 = vld [vmem:[%s1329] sm:$0x1]
        %v1331 = vld [vmem:[#allocation4 + $0x8] sm:$0x1]
        %v1332 = vstv %s1328
        %v1333 = vmul.f32 %v1332, %v1331
        %v1334 = vadd.f32 %v1330, %v1333
        %1335 = vst [vmem:[%s1329] sm:$0x1] %v1334
        %s1336 = sld [smem:[#allocation7 + %s1203]]
        %p1337 = scmp.lt.s32.totalorder %s1203, 50
        %s1338 = scalar_select %p1337, 1.0, 0.0
        %s1339 = scalar_lea.vmem [#allocation3], %s1336
        %v1340 = vld [vmem:[%s1339] sm:$0x1]
        %v1341 = vld [vmem:[#allocation4 + $0x9] sm:$0x1]
        %v1342 = vstv %s1338
        %v1343 = vmul.f32 %v1342, %v1341
        %v1344 = vadd.f32 %v1340, %v1343
        %1345 = vst [vmem:[%s1339] sm:$0x1] %v1344
        %s1346 = sld [smem:[#allocation7 + %s1208]]
        %p1347 = scmp.lt.s32.totalorder %s1208, 50
        %s1348 = scalar_select %p1347, 1.0, 0.0
        %s1349 = scalar_lea.vmem [#allocation3], %s1346
        %v1350 = vld [vmem:[%s1349] sm:$0x1]
        %v1351 = vld [vmem:[#allocation4 + $0xa] sm:$0x1]
        %v1352 = vstv %s1348
        %v1353 = vmul.f32 %v1352, %v1351
        %v1354 = vadd.f32 %v1350, %v1353
        %1355 = vst [vmem:[%s1349] sm:$0x1] %v1354
        %s1356 = sld [smem:[#allocation7 + %s1213]]
        %p1357 = scmp.lt.s32.totalorder %s1213, 50
        %s1358 = scalar_select %p1357, 1.0, 0.0
        %s1359 = scalar_lea.vmem [#allocation3], %s1356
        %v1360 = vld [vmem:[%s1359] sm:$0x1]
        %v1361 = vld [vmem:[#allocation4 + $0xb] sm:$0x1]
        %v1362 = vstv %s1358
        %v1363 = vmul.f32 %v1362, %v1361
        %v1364 = vadd.f32 %v1360, %v1363
        %1365 = vst [vmem:[%s1359] sm:$0x1] %v1364
        %s1366 = sld [smem:[#allocation7 + %s1218]]
        %p1367 = scmp.lt.s32.totalorder %s1218, 50
        %s1368 = scalar_select %p1367, 1.0, 0.0
        %s1369 = scalar_lea.vmem [#allocation3], %s1366
        %v1370 = vld [vmem:[%s1369] sm:$0x1]
        %v1371 = vld [vmem:[#allocation4 + $0xc] sm:$0x1]
        %v1372 = vstv %s1368
        %v1373 = vmul.f32 %v1372, %v1371
        %v1374 = vadd.f32 %v1370, %v1373
        %1375 = vst [vmem:[%s1369] sm:$0x1] %v1374
        %s1376 = sld [smem:[#allocation7 + %s1223]]
        %p1377 = scmp.lt.s32.totalorder %s1223, 50
        %s1378 = scalar_select %p1377, 1.0, 0.0
        %s1379 = scalar_lea.vmem [#allocation3], %s1376
        %v1380 = vld [vmem:[%s1379] sm:$0x1]
        %v1381 = vld [vmem:[#allocation4 + $0xd] sm:$0x1]
        %v1382 = vstv %s1378
        %v1383 = vmul.f32 %v1382, %v1381
        %v1384 = vadd.f32 %v1380, %v1383
        %1385 = vst [vmem:[%s1379] sm:$0x1] %v1384
        %s1386 = sld [smem:[#allocation7 + %s1228]]
        %p1387 = scmp.lt.s32.totalorder %s1228, 50
        %s1388 = scalar_select %p1387, 1.0, 0.0
        %s1389 = scalar_lea.vmem [#allocation3], %s1386
        %v1390 = vld [vmem:[%s1389] sm:$0x1]
        %v1391 = vld [vmem:[#allocation4 + $0xe] sm:$0x1]
        %v1392 = vstv %s1388
        %v1393 = vmul.f32 %v1392, %v1391
        %v1394 = vadd.f32 %v1390, %v1393
        %1395 = vst [vmem:[%s1389] sm:$0x1] %v1394
        %s1396 = sld [smem:[#allocation7 + %s1233]]
        %p1397 = scmp.lt.s32.totalorder %s1233, 50
        %s1398 = scalar_select %p1397, 1.0, 0.0
        %s1399 = scalar_lea.vmem [#allocation3], %s1396
        %v1400 = vld [vmem:[%s1399] sm:$0x1]
        %v1401 = vld [vmem:[#allocation4 + $0xf] sm:$0x1]
        %v1402 = vstv %s1398
        %v1403 = vmul.f32 %v1402, %v1401
        %v1404 = vadd.f32 %v1400, %v1403
        %1405 = vst [vmem:[%s1399] sm:$0x1] %v1404
        %p1406 = scmp.eq.s32.totalorder %s43, 3
        // Predicated region
        $region93: #{multi_level_interaction.1} parent=87 // pred_check
          %p1407 = pneg %p1406
        $region94: #{multi_level_interaction.1} parent=87 // pred_check_branch
          %1409 = sbr.rel (%p1407) target = $region96
        $region95: #{multi_level_interaction.1} parent=87 // pred_region
          %v1410 = vld [vmem:[#allocation3] sm:$0xff]
          %v1411 = vld [vmem:[#allocation3 + $0x8] sm:$0xff]
          %v1412 = vld [vmem:[%s15] sm:$0xff]
          %v1413 = vld [vmem:[%s15 + $0x8] sm:$0xff]
          %v1414 = vld [vmem:[%s15 + $0x10] sm:$0xff]
          %v1415 = vld [vmem:[%s15 + $0x18] sm:$0xff]
          %v1416 = vld [vmem:[%s15 + $0x20] sm:$0xff]
          %v1417 = vld [vmem:[%s15 + $0x28] sm:$0xff]
          %v1418 = vld [vmem:[%s15 + $0x30] sm:$0xff]
          %v1419 = vld [vmem:[%s15 + $0x38] sm:$0xff]
          %v1420 = vld [vmem:[%s15 + $0x40] sm:$0xff]
          %v1421 = vld [vmem:[%s15 + $0x48] sm:$0xff]
          %v1422 = vld [vmem:[%s15 + $0x50] sm:$0xff]
          %v1423 = vld [vmem:[%s15 + $0x58] sm:$0xff]
          %v1424 = vld [vmem:[%s15 + $0x60] sm:$0xff]
          %v1425 = vld [vmem:[%s15 + $0x68] sm:$0xff]
          %v1426 = vld [vmem:[%s15 + $0x70] sm:$0xff]
          %v1427 = vld [vmem:[%s15 + $0x78] sm:$0xff]
          %v1428 = vld [vmem:[%s16] sm:$0x1]
          %v1430 = vlaneseq
          %v1431 = vshrl.u32 %v1430, 7
          %v1432 = vsub.s32 0, %v1431
          %v1433 = vrot.slane %v1428, %v1432
          %1435 = vmatprep.subr.mxu0 0.0
          %1436 = vmatpush1.msra.mxu0 %v1412
          %1437 = vmatprep.subr.mxu0 0.0
          %1438 = vmatpush1.msra.mxu0 %v1413
          %1439 = vmatprep.subr.mxu0 0.0
          %1440 = vmatpush1.msra.mxu0 %v1414
          %1441 = vmatprep.subr.mxu0 0.0
          %1442 = vmatpush1.msra.mxu0 %v1415
          %1443 = vmatprep.subr.mxu0 0.0
          %1444 = vmatpush1.msra.mxu0 %v1416
          %1445 = vmatprep.subr.mxu0 0.0
          %1446 = vmatpush1.msra.mxu0 %v1417
          %1447 = vmatprep.subr.mxu0 0.0
          %1448 = vmatpush1.msra.mxu0 %v1418
          %1449 = vmatprep.subr.mxu0 0.0
          %1450 = vmatpush1.msra.mxu0 %v1419
          %1451 = vmatprep.subr.mxu0 0.0
          %1452 = vmatpush1.msra.mxu0 %v1420
          %1453 = vmatprep.subr.mxu0 0.0
          %1454 = vmatpush1.msra.mxu0 %v1421
          %1455 = vmatprep.subr.mxu0 0.0
          %1456 = vmatpush1.msra.mxu0 %v1422
          %1457 = vmatprep.subr.mxu0 0.0
          %1458 = vmatpush1.msra.mxu0 %v1423
          %1459 = vmatprep.subr.mxu0 0.0
          %1460 = vmatpush1.msra.mxu0 %v1424
          %1461 = vmatprep.subr.mxu0 0.0
          %1462 = vmatpush1.msra.mxu0 %v1425
          %1463 = vmatprep.subr.mxu0 0.0
          %1464 = vmatpush1.msra.mxu0 %v1426
          %1465 = vmatprep.subr.mxu0 0.0
          %1466 = vmatpush1.msra.mxu0 %v1427
          %1467 = vmatprep.subr.mxu0 0.0
          %1468 = vmatpush1.msra.mxu0 0.0
          %1469 = vmatprep.subr.mxu0 0.0
          %1470 = vmatpush1.msra.mxu0 0.0
          %1471 = vmatprep.subr.mxu0 0.0
          %1472 = vmatpush1.msra.mxu0 0.0
          %1473 = vmatprep.subr.mxu0 0.0
          %1474 = vmatpush1.msra.mxu0 0.0
          %1475 = vmatprep.subr.mxu0 0.0
          %1476 = vmatpush1.msra.mxu0 0.0
          %1477 = vmatprep.subr.mxu0 0.0
          %1478 = vmatpush1.msra.mxu0 0.0
          %1479 = vmatprep.subr.mxu0 0.0
          %1480 = vmatpush1.msra.mxu0 0.0
          %1481 = vmatprep.subr.mxu0 0.0
          %1482 = vmatpush1.msra.mxu0 0.0
          %1483 = vmatprep.subr.mxu0 0.0
          %1484 = vmatpush1.msra.mxu0 0.0
          %1485 = vmatprep.subr.mxu0 0.0
          %1486 = vmatpush1.msra.mxu0 0.0
          %1487 = vmatprep.subr.mxu0 0.0
          %1488 = vmatpush1.msra.mxu0 0.0
          %1489 = vmatprep.subr.mxu0 0.0
          %1490 = vmatpush1.msra.mxu0 0.0
          %1491 = vmatprep.subr.mxu0 0.0
          %1492 = vmatpush1.msra.mxu0 0.0
          %1493 = vmatprep.subr.mxu0 0.0
          %1494 = vmatpush1.msra.mxu0 0.0
          %1495 = vmatprep.subr.mxu0 0.0
          %1496 = vmatpush1.msra.mxu0 0.0
          %1497 = vmatprep.subr.mxu0 0.0
          %1498 = vmatpush1.msra.mxu0 0.0
          %1499 = vmatprep.mubr.f32.mxu0 0.0
          %1500 = vmatmul.mubr.f32.gmra.mrb[0].mxu0 %v1410
          %v1501 = vpop.f32.mrb[0].mxu0
          %v1502 = vadd.f32 %v1433, %v1501
          %v1503 = vpop.f32.mrb[0].mxu0
          %1504 = vmatprep.mubr.f32.mxu0 0.0
          %1505 = vmatmul.mubr.f32.gmra.mrb[0].mxu0 %v1411
          %v1506 = vpop.f32.mrb[0].mxu0
          %v1507 = vadd.f32 %v1433, %v1506
          %v1508 = vpop.f32.mrb[0].mxu0
          %1509 = vdwg.mxu0
          %v1510 = vmul.f32 %v1502, 0.5
          %v1511 = vmul.f32 %v1507, 0.5
          %vm1512 = vcmp.gt.f32.partialorder %v1510, 14.0
          %vm1513 = vcmp.gt.f32.partialorder %v1511, 14.0
          %v1514 = vmin.f32 %v1510, 14.0
          %v1515 = vmin.f32 %v1511, 14.0
          %v1516 = vmul.f32 %v1514, 1.442695
          %v1517 = vpow.pop %v1516
          %v1518 = vmul.f32 %v1515, 1.442695
          %v1519 = vpow.pop %v1518
          %v1520 = vadd.f32 %v1517, 1.0
          %v1521 = vadd.f32 %v1519, 1.0
          %v1522 = vlog2.pop %v1520
          %v1523 = vmul.f32 %v1522, 0.6931472
          %v1524 = vlog2.pop %v1521
          %v1525 = vmul.f32 %v1524, 0.6931472
          %v1526 = vmul.f32 %v1523, 2.0
          %v1527 = vmul.f32 %v1525, 2.0
          %v1528 = vsel %vm1512, %v1502, %v1526
          %v1529 = vsel %vm1513, %v1507, %v1527
          %v1530 = vld [vmem:[%s2] sm:$0xff]
          %v1531 = vld [vmem:[%s2 + $0x8] sm:$0xff]
          %v1532 = vld [vmem:[%s17] sm:$0xff]
          %v1533 = vld [vmem:[%s17 + $0x8] sm:$0xff]
          %v1534 = vld [vmem:[%s17 + $0x10] sm:$0xff]
          %v1535 = vld [vmem:[%s17 + $0x18] sm:$0xff]
          %v1536 = vld [vmem:[%s17 + $0x20] sm:$0xff]
          %v1537 = vld [vmem:[%s17 + $0x28] sm:$0xff]
          %v1538 = vld [vmem:[%s17 + $0x30] sm:$0xff]
          %v1539 = vld [vmem:[%s17 + $0x38] sm:$0xff]
          %v1540 = vld [vmem:[%s17 + $0x40] sm:$0xff]
          %v1541 = vld [vmem:[%s17 + $0x48] sm:$0xff]
          %v1542 = vld [vmem:[%s17 + $0x50] sm:$0xff]
          %v1543 = vld [vmem:[%s17 + $0x58] sm:$0xff]
          %v1544 = vld [vmem:[%s17 + $0x60] sm:$0xff]
          %v1545 = vld [vmem:[%s17 + $0x68] sm:$0xff]
          %v1546 = vld [vmem:[%s17 + $0x70] sm:$0xff]
          %v1547 = vld [vmem:[%s17 + $0x78] sm:$0xff]
          %v1548 = vld [vmem:[%s18] sm:$0x1]
          %v1550 = vlaneseq
          %v1551 = vshrl.u32 %v1550, 7
          %v1552 = vsub.s32 0, %v1551
          %v1553 = vrot.slane %v1548, %v1552
          %1555 = vmatprep.subr.mxu0 0.0
          %1556 = vmatpush1.msra.mxu0 %v1532
          %1557 = vmatprep.subr.mxu0 0.0
          %1558 = vmatpush1.msra.mxu0 %v1533
          %1559 = vmatprep.subr.mxu0 0.0
          %1560 = vmatpush1.msra.mxu0 %v1534
          %1561 = vmatprep.subr.mxu0 0.0
          %1562 = vmatpush1.msra.mxu0 %v1535
          %1563 = vmatprep.subr.mxu0 0.0
          %1564 = vmatpush1.msra.mxu0 %v1536
          %1565 = vmatprep.subr.mxu0 0.0
          %1566 = vmatpush1.msra.mxu0 %v1537
          %1567 = vmatprep.subr.mxu0 0.0
          %1568 = vmatpush1.msra.mxu0 %v1538
          %1569 = vmatprep.subr.mxu0 0.0
          %1570 = vmatpush1.msra.mxu0 %v1539
          %1571 = vmatprep.subr.mxu0 0.0
          %1572 = vmatpush1.msra.mxu0 %v1540
          %1573 = vmatprep.subr.mxu0 0.0
          %1574 = vmatpush1.msra.mxu0 %v1541
          %1575 = vmatprep.subr.mxu0 0.0
          %1576 = vmatpush1.msra.mxu0 %v1542
          %1577 = vmatprep.subr.mxu0 0.0
          %1578 = vmatpush1.msra.mxu0 %v1543
          %1579 = vmatprep.subr.mxu0 0.0
          %1580 = vmatpush1.msra.mxu0 %v1544
          %1581 = vmatprep.subr.mxu0 0.0
          %1582 = vmatpush1.msra.mxu0 %v1545
          %1583 = vmatprep.subr.mxu0 0.0
          %1584 = vmatpush1.msra.mxu0 %v1546
          %1585 = vmatprep.subr.mxu0 0.0
          %1586 = vmatpush1.msra.mxu0 %v1547
          %1587 = vmatprep.subr.mxu0 0.0
          %1588 = vmatpush1.msra.mxu0 0.0
          %1589 = vmatprep.subr.mxu0 0.0
          %1590 = vmatpush1.msra.mxu0 0.0
          %1591 = vmatprep.subr.mxu0 0.0
          %1592 = vmatpush1.msra.mxu0 0.0
          %1593 = vmatprep.subr.mxu0 0.0
          %1594 = vmatpush1.msra.mxu0 0.0
          %1595 = vmatprep.subr.mxu0 0.0
          %1596 = vmatpush1.msra.mxu0 0.0
          %1597 = vmatprep.subr.mxu0 0.0
          %1598 = vmatpush1.msra.mxu0 0.0
          %1599 = vmatprep.subr.mxu0 0.0
          %1600 = vmatpush1.msra.mxu0 0.0
          %1601 = vmatprep.subr.mxu0 0.0
          %1602 = vmatpush1.msra.mxu0 0.0
          %1603 = vmatprep.subr.mxu0 0.0
          %1604 = vmatpush1.msra.mxu0 0.0
          %1605 = vmatprep.subr.mxu0 0.0
          %1606 = vmatpush1.msra.mxu0 0.0
          %1607 = vmatprep.subr.mxu0 0.0
          %1608 = vmatpush1.msra.mxu0 0.0
          %1609 = vmatprep.subr.mxu0 0.0
          %1610 = vmatpush1.msra.mxu0 0.0
          %1611 = vmatprep.subr.mxu0 0.0
          %1612 = vmatpush1.msra.mxu0 0.0
          %1613 = vmatprep.subr.mxu0 0.0
          %1614 = vmatpush1.msra.mxu0 0.0
          %1615 = vmatprep.subr.mxu0 0.0
          %1616 = vmatpush1.msra.mxu0 0.0
          %1617 = vmatprep.subr.mxu0 0.0
          %1618 = vmatpush1.msra.mxu0 0.0
          %1619 = vmatprep.mubr.f32.mxu0 0.0
          %1620 = vmatmul.mubr.f32.gmra.mrb[0].mxu0 %v1528
          %v1621 = vpop.f32.mrb[0].mxu0
          %v1622 = vadd.f32 %v1553, %v1621
          %v1623 = vpop.f32.mrb[0].mxu0
          %1624 = vmatprep.mubr.f32.mxu0 0.0
          %1625 = vmatmul.mubr.f32.gmra.mrb[0].mxu0 %v1529
          %v1626 = vpop.f32.mrb[0].mxu0
          %v1627 = vadd.f32 %v1553, %v1626
          %v1628 = vpop.f32.mrb[0].mxu0
          %1629 = vdwg.mxu0
          %v1630 = vadd.f32 %v1530, %v1622
          %v1631 = vadd.f32 %v1531, %v1627
          %1632 = vst [vmem:[#allocation8] sm:$0xff] %v1630
          %1633 = vst [vmem:[#allocation8 + $0x8] sm:$0xff] %v1631
        $region96: #{multi_level_interaction.1} parent=87 // pred_fallthru
          _
        %s1634 = smul.u32 2, %s43
        %p1635 = scmp.lt.s32.totalorder %s1634, 7
        %s1636 = scalar_select %p1635, %s1634, 7
        %s1637 = smul.addr %s1636, 8
        %s1638 = scalar_lea.vmem %s20, %s1637
        // Predicated region
        $region97: #{multi_level_interaction.1} parent=87 // pred_check
          %p1639 = pneg %p423
        $region98: #{multi_level_interaction.1} parent=87 // pred_check_branch
          %1641 = sbr.rel (%p1639) target = $region100
        $region99: #{multi_level_interaction.1} parent=87 // pred_region
          %s1643 = ssub.s32 256, 256
          %1644 = vsyncadd [#allocation9], %s1643
          %s1645 = sshll.u32 [#allocation8], 4
          %s1646 = int_to_ptr.vmem [resolvable:$true] %s1645
          %1651 = dma.vmem_to_hbm [thread:$0]  %s1646, 256, %s19, [#allocation9], 128, 128, 8
        $region100: #{multi_level_interaction.1} parent=87 // pred_fallthru
          _
        // Predicated region
        $region101: #{multi_level_interaction.1} parent=87 // pred_check
          %p1652 = pneg %p449
        $region102: #{multi_level_interaction.1} parent=87 // pred_check_branch
          %1654 = sbr.rel (%p1652) target = $region104
        $region103: #{multi_level_interaction.1} parent=87 // pred_region
          %s1655 = smul.u32 2, %s43
        $region104: #{multi_level_interaction.1} parent=87 // pred_fallthru
          _
        // Predicated region
        $region105: #{multi_level_interaction.1} parent=87 // pred_check
          %p1656 = pneg %p423
        $region106: #{multi_level_interaction.1} parent=87 // pred_check_branch
          %1658 = sbr.rel (%p1656) target = $region108
        $region107: #{multi_level_interaction.1} parent=87 // pred_region
          %1659 = dma.done [#allocation9], 256
        $region108: #{multi_level_interaction.1} parent=87 // pred_fallthru
          _
      $region88: #{multi_level_interaction.1} parent=5 // pred_fallthru
        _
      %p1660 = scmp.le.s32.totalorder 2, %s38
      // Predicated region
      $region109: #{multi_level_interaction.1} parent=5 // pred_check
        %p1661 = pneg %p1660
      $region110: #{multi_level_interaction.1} parent=5 // pred_check_branch
        %1663 = sbr.rel (%p1661) target = $region112
      $region111: #{multi_level_interaction.1} parent=5 // pred_region
        %s1664 = ssub.s32 %s38, 2
        // Predicated region
        $region113: #{multi_level_interaction.1} parent=111 // pred_check
          %p1665 = pneg %p455
        $region114: #{multi_level_interaction.1} parent=111 // pred_check_branch
          %1667 = sbr.rel (%p1665) target = $region116
        $region115: #{multi_level_interaction.1} parent=111 // pred_region
          %s1668 = smul.u32 2, %s44
          %p1669 = scmp.lt.s32.totalorder %s1668, 7
          %s1670 = scalar_select %p1669, %s1668, 7
          %s1671 = smul.addr %s1670, 8
          %s1672 = scalar_lea.vmem %s20, %s1671
        $region116: #{multi_level_interaction.1} parent=111 // pred_fallthru
          _
      $region112: #{multi_level_interaction.1} parent=5 // pred_fallthru
        _
    $region6: #{multi_level_interaction.1} parent=1 // loop_footer
      %s42 = sadd.s32 1, %s38
    $region7: #{multi_level_interaction.1} parent=1 // loop_footer_branch
      %37 = sbr.rel target = $region3
    $region8: #{multi_level_interaction.1} parent=1 // loop_exit
      _
    %1673 = vsyncpa [#allocation9], 1
    %s1674 = scalar_lea.sflag [#allocation9], 1
    %1675 = vsyncpa %s1674, 1

</llo_original>
